<compile_context>
chip_gen: v7x
topology: tpu7x:2x2x1
jax: 0.10.0
libtpu: 0.0.40
codegen_flags: <defaults>
</compile_context>

<pallas_src>
import math

import jax
import jax.numpy as jnp
from jax import lax
from jax.experimental import pallas as pl
from jax.experimental.pallas import tpu as pltpu


def bigram_seg_kernel(x_ref, w1x_ref, w1p_ref, b1_ref, w2_ref, b2_ref,
                      logits_ref, preds_ref,
                      oa_ref, cand_ref, oh_ref, carry_ref):
    """One time-block.  Row layout everywhere: row r = t*B + b (time-major).

    x_ref      : (TB, Din)   f32   input rows for this block (TB = Tblk*B)
    w1x_ref    : (Din, H)    f32   rows of W1 multiplying the input features
    w1p_ref    : (C, H)      f32   rows of W1 multiplying the prev one-hot
    b1_ref     : (1, H)      f32
    w2_ref     : (H, C)      f32
    b2_ref     : (1, C)      f32
    logits_ref : (TB, C)     f32   output block (flattened (t, b) rows)
    preds_ref  : (TB, 1)     i32   output block
    oa_ref     : (TB, C*C)   f32   scratch: one-hot(argmax) per prev-label
    cand_ref   : (TB, C*C)   f32   scratch: candidate logits per prev-label
    oh_ref     : (TB, C)     f32   scratch: entering one-hot per step (history)
    carry_ref  : (B, C)      f32   scratch: cross-block carry (persistent)
    """
    TB = oa_ref.shape[0]
    C = logits_ref.shape[1]
    B = carry_ref.shape[0]
    Tblk = TB // B

    # Reference zero-initializes preds, so step 0 sees one_hot(label 0).
    @pl.when(pl.program_id(0) == 0)
    def _init():
        bc = lax.broadcasted_iota(jnp.int32, (B, C), 1)
        carry_ref[...] = (bc == 0).astype(jnp.float32)

    # ---- Phase 1: bulk candidate logits + per-candidate argmax (hoisted) ---
    pre = (jnp.dot(x_ref[...], w1x_ref[...],
                   preferred_element_type=jnp.float32)
           + b1_ref[...])                                       # (TB, H)
    # Stack the C "previous label" variants on sublanes -> one fused matmul.
    pre_all = jnp.concatenate(
        [pre + w1p_ref[pl.ds(cp, 1), :] for cp in range(C)], axis=0)  # (C*TB,H)
    cand_all = (jnp.dot(jnp.tanh(pre_all), w2_ref[...],
                        preferred_element_type=jnp.float32)
                + b2_ref[...])                                  # (C*TB, C)

    col = lax.broadcasted_iota(jnp.int32, (TB, C), 1)
    oa_parts, cand_parts = [], []
    for cp in range(C):
        cand_cp = cand_all[cp * TB:(cp + 1) * TB, :]            # (TB, C)
        mx = jnp.max(cand_cp, axis=-1, keepdims=True)
        # first-occurrence argmax (matches torch.argmax tie-breaking)
        idx = jnp.min(jnp.where(cand_cp == mx, col, C), axis=-1, keepdims=True)
        oa_parts.append((idx == col).astype(jnp.float32))
        cand_parts.append(cand_cp)
    oa_ref[...] = jnp.concatenate(oa_parts, axis=-1)            # (TB, C*C)
    cand_ref[...] = jnp.concatenate(cand_parts, axis=-1)        # (TB, C*C)

    # ---- Phase 2: serial decode — pure VPU selects, no HBM stores ----------
    def body(i, prev_oh):
        r0 = pl.multiple_of(i * B, B)
        oh_ref[pl.ds(r0, B), :] = prev_oh                       # history (VMEM)
        oa_i = oa_ref[pl.ds(r0, B), :]                          # (B, C*C)
        nxt = prev_oh[:, 0:1] * oa_i[:, 0:C]
        for cp in range(1, C):
            nxt = nxt + prev_oh[:, cp:cp + 1] * oa_i[:, cp * C:(cp + 1) * C]
        return nxt                                              # next one-hot

    carry_ref[...] = lax.fori_loop(0, Tblk, body, carry_ref[...],
                                   unroll=min(8, Tblk))

    # ---- Phase 3: vectorized reconstruction + single block stores ----------
    # logits[r] = candidate row matching the label that ENTERED step r
    # (shifted-by-one prediction, incl. the cross-block carry).
    oh = oh_ref[...]                                            # (TB, C)
    cand_p = cand_ref[...]                                      # (TB, C*C)
    logit = oh[:, 0:1] * cand_p[:, 0:C]
    for cp in range(1, C):
        logit = logit + oh[:, cp:cp + 1] * cand_p[:, cp * C:(cp + 1) * C]
    logits_ref[...] = logit                                     # (TB, C)
    mx = jnp.max(logit, axis=-1, keepdims=True)
    preds_ref[...] = jnp.min(jnp.where(logit == mx, col, C),
                             axis=-1, keepdims=True).astype(jnp.int32)


def init_params(key, input_size, hidden_size, output_size):
    """Deterministic synthetic weights (shapes match the nn.Linear layers)."""
    in_dim = input_size + output_size
    k1, k2, k3, k4 = jax.random.split(key, 4)
    s1 = 1.0 / jnp.sqrt(in_dim)
    s2 = 1.0 / jnp.sqrt(hidden_size)
    w1 = jax.random.uniform(k1, (in_dim, hidden_size), jnp.float32, -s1, s1)
    b1 = jax.random.uniform(k2, (1, hidden_size), jnp.float32, -s1, s1)
    w2 = jax.random.uniform(k3, (hidden_size, output_size), jnp.float32, -s2, s2)
    b2 = jax.random.uniform(k4, (1, output_size), jnp.float32, -s2, s2)
    return w1, b1, w2, b2


def bigram_seg_forward(x, w1, b1, w2, b2, input_size, output_size,
                       time_block=512):
    """x: (B, L, input_size) f32 -> (logits (B, L, C) f32, preds (B, L) i32)."""
    B, L, Din = x.shape
    assert Din == input_size
    C = output_size
    H = w1.shape[1]
    assert w1.shape[0] == Din + C

    # Split W1 into input-feature rows and prev-one-hot rows (mathematically
    # identical to concatenating [input, one_hot] before W1; fp accumulation
    # order differs slightly from the reference).
    w1x = w1[:Din, :]
    w1p = w1[Din:, :]
    b1 = b1.reshape(1, H)
    b2 = b2.reshape(1, C)

    # Time block: a multiple of 8 so every (TB, .) block is sublane-aligned.
    # L is padded up to a multiple of Tblk; padding trails the real sequence
    # and the carry only flows forward, so the first L outputs are unaffected.
    Tblk = max(8, min(time_block, L))
    Tblk = ((Tblk + 7) // 8) * 8
    Lp = ((L + Tblk - 1) // Tblk) * Tblk
    NT = Lp // Tblk
    TB = Tblk * B

    x_t = jnp.transpose(x, (1, 0, 2))                   # (L, B, Din) time-major
    if Lp != L:
        x_t = jnp.pad(x_t, ((0, Lp - L), (0, 0), (0, 0)))
    x2d = x_t.reshape(Lp * B, Din)                      # row r = t*B + b

    def const(shape):
        return pl.BlockSpec(shape, lambda t: (0, 0))

    grid_spec = pltpu.PrefetchScalarGridSpec(
        num_scalar_prefetch=0,
        grid=(NT,),
        in_specs=[
            pl.BlockSpec((TB, Din), lambda t: (t, 0)),  # x rows (pipelined)
            const((Din, H)),                            # w1x
            const((C, H)),                              # w1p
            const((1, H)),                              # b1
            const((H, C)),                              # w2
            const((1, C)),                              # b2
        ],
        out_specs=(
            pl.BlockSpec((TB, C), lambda t: (t, 0)),    # logits rows
            pl.BlockSpec((TB, 1), lambda t: (t, 0)),    # preds rows
        ),
        scratch_shapes=[
            pltpu.VMEM((TB, C * C), jnp.float32),       # one-hot argmax table
            pltpu.VMEM((TB, C * C), jnp.float32),       # packed candidates
            pltpu.VMEM((TB, C), jnp.float32),           # entering one-hot hist
            pltpu.VMEM((B, C), jnp.float32),            # cross-block carry
        ],
    )

    logits_rows, preds_rows = pl.pallas_call(
        bigram_seg_kernel,
        out_shape=(
            jax.ShapeDtypeStruct((Lp * B, C), jnp.float32),
            jax.ShapeDtypeStruct((Lp * B, 1), jnp.int32),
        ),
        grid_spec=grid_spec,
        compiler_params=pltpu.CompilerParams(
            dimension_semantics=("arbitrary",)),        # sequential time carry
    )(x2d, w1x, w1p, b1, w2, b2)

    logits = jnp.transpose(logits_rows.reshape(Lp, B, C)[:L], (1, 0, 2))
    preds = jnp.transpose(preds_rows.reshape(Lp, B)[:L], (1, 0))
    return logits, preds


def bigram_seg_reference(x, w1, b1, w2, b2, output_size):
    """Pure-JAX reference mirroring the PyTorch loop, for validation."""
    B, L, Din = x.shape
    C = output_size

    def step(prev_pred, x_i):
        oh = jax.nn.one_hot(prev_pred, C, dtype=jnp.float32)
        xi = jnp.concatenate([x_i, oh], axis=-1)
        h = jnp.tanh(xi @ w1 + b1[0])
        logit = h @ w2 + b2[0]
        pred = jnp.argmax(logit, axis=-1).astype(jnp.int32)
        return pred, (logit, pred)

    prev0 = jnp.zeros((B,), jnp.int32)  # preds[:, -1] is still zero at i=0
    _, (logits_t, preds_t) = lax.scan(step, prev0, jnp.transpose(x, (1, 0, 2)))
    return jnp.transpose(logits_t, (1, 0, 2)), jnp.transpose(preds_t, (1, 0))


if __name__ == "__main__":
    B, L = 2, 16
    input_size, hidden_size, output_size = 32, 32, 4

    key = jax.random.PRNGKey(0)
    kx, kp = jax.random.split(key)
    x = jax.random.normal(kx, (B, L, input_size), dtype=jnp.float32)
    w1, b1, w2, b2 = init_params(kp, input_size, hidden_size, output_size)

    # time_block=8 -> a 2-step grid, exercising the cross-block carry scratch.
    logits, preds = bigram_seg_forward(x, w1, b1, w2, b2,
                                       input_size, output_size, time_block=8)
    jax.block_until_ready((logits, preds))

    ref_logits, ref_preds = bigram_seg_reference(x, w1, b1, w2, b2, output_size)
    assert logits.shape == (B, L, output_size) and preds.shape == (B, L)
    assert jnp.allclose(logits, ref_logits, atol=1e-5, rtol=1e-5)
    assert jnp.array_equal(preds, ref_preds)

    print("KERNEL_OK")
</pallas_src>

<mosaic_0001>
module attributes {stable_mosaic.version = 11 : i64} {
  func.func @bigram_seg_kernel(%arg0: i32, %arg1: memref<16x32xf32, #tpu.memory_space<vmem>>, %arg2: memref<32x32xf32, #tpu.memory_space<vmem>>, %arg3: memref<4x32xf32, #tpu.memory_space<vmem>>, %arg4: memref<1x32xf32, #tpu.memory_space<vmem>>, %arg5: memref<32x4xf32, #tpu.memory_space<vmem>>, %arg6: memref<1x4xf32, #tpu.memory_space<vmem>>, %arg7: memref<16x4xf32, #tpu.memory_space<vmem>>, %arg8: memref<16x1xi32, #tpu.memory_space<vmem>>, %arg9: memref<16x16xf32, #tpu.memory_space<vmem>>, %arg10: memref<16x16xf32, #tpu.memory_space<vmem>>, %arg11: memref<16x4xf32, #tpu.memory_space<vmem>>, %arg12: memref<2x4xf32, #tpu.memory_space<vmem>>) attributes {dimension_semantics = [#tpu.dimension_semantics<arbitrary>], iteration_bounds = array<i64: 2>, scalar_prefetch = 0 : i64, scratch_operands = 4 : i64, tpu.core_type = #tpu.core_type<tc>, window_params = [{transform_indices = @transform_0, window_bounds = array<i64: 16, 32>}, {pipeline_mode = #tpu.pipeline_mode<synchronous>, transform_indices = @transform_1, window_bounds = array<i64: 32, 32>}, {pipeline_mode = #tpu.pipeline_mode<synchronous>, transform_indices = @transform_2, window_bounds = array<i64: 4, 32>}, {pipeline_mode = #tpu.pipeline_mode<synchronous>, transform_indices = @transform_3, window_bounds = array<i64: 1, 32>}, {pipeline_mode = #tpu.pipeline_mode<synchronous>, transform_indices = @transform_4, window_bounds = array<i64: 32, 4>}, {pipeline_mode = #tpu.pipeline_mode<synchronous>, transform_indices = @transform_5, window_bounds = array<i64: 1, 4>}, {transform_indices = @transform_6, window_bounds = array<i64: 16, 4>}, {transform_indices = @transform_7, window_bounds = array<i64: 16, 1>}]} {
    %c0_i32 = arith.constant 0 : i32
    %0 = arith.cmpi eq, %arg0, %c0_i32 : i32
    %1 = arith.extui %0 : i1 to i32
    %c0_i32_0 = arith.constant 0 : i32
    %2 = arith.cmpi ne, %1, %c0_i32_0 : i32
    scf.if %2 {
      %318 = tpu.iota {dimensions = array<i32: 1>} : vector<2x4xi32>
      %c0_i32_72 = arith.constant 0 : i32
      %319 = vector.broadcast %c0_i32_72 : i32 to vector<2x4xi32>
      %320 = arith.cmpi eq, %318, %319 : vector<2x4xi32>
      %321 = arith.extui %320 : vector<2x4xi1> to vector<2x4xi32>
      %322 = arith.sitofp %321 : vector<2x4xi32> to vector<2x4xf32>
      %c0_73 = arith.constant 0 : index
      %c0_74 = arith.constant 0 : index
      %323 = vector.load %arg12[%c0_73, %c0_74] : memref<2x4xf32, #tpu.memory_space<vmem>>, vector<2x4xf32>
      tpu.vector_store %arg12[%c0_73, %c0_74], %322 {strides = array<i32>} : memref<2x4xf32, #tpu.memory_space<vmem>>, vector<2x4xf32>,
    } else {
    }
    %c0 = arith.constant 0 : index
    %c0_1 = arith.constant 0 : index
    %3 = vector.load %arg1[%c0, %c0_1] : memref<16x32xf32, #tpu.memory_space<vmem>>, vector<16x32xf32>
    %c0_2 = arith.constant 0 : index
    %c0_3 = arith.constant 0 : index
    %4 = vector.load %arg2[%c0_2, %c0_3] : memref<32x32xf32, #tpu.memory_space<vmem>>, vector<32x32xf32>
    %cst = arith.constant dense<0.000000e+00> : vector<16x32xf32>
    %5 = tpu.matmul %3, %4, %cst {dimension_numbers = #tpu.dot_dimension_numbers<[1], [0], [0], [1], [0, 0, 1, 1], [], []>} : vector<16x32xf32>, vector<32x32xf32>, vector<16x32xf32> -> vector<16x32xf32>
    %c0_4 = arith.constant 0 : index
    %c0_5 = arith.constant 0 : index
    %6 = vector.load %arg4[%c0_4, %c0_5] : memref<1x32xf32, #tpu.memory_space<vmem>>, vector<1x32xf32>
    %7 = vector.broadcast %6 : vector<1x32xf32> to vector<16x32xf32>
    %8 = arith.addf %5, %7 : vector<16x32xf32>
    %c0_6 = arith.constant 0 : index
    %c0_7 = arith.constant 0 : index
    %9 = vector.load %arg3[%c0_6, %c0_7] : memref<4x32xf32, #tpu.memory_space<vmem>>, vector<1x32xf32>
    %10 = vector.broadcast %9 : vector<1x32xf32> to vector<16x32xf32>
    %11 = arith.addf %8, %10 : vector<16x32xf32>
    %c1 = arith.constant 1 : index
    %c0_8 = arith.constant 0 : index
    %12 = vector.load %arg3[%c1, %c0_8] : memref<4x32xf32, #tpu.memory_space<vmem>>, vector<1x32xf32>
    %13 = vector.broadcast %12 : vector<1x32xf32> to vector<16x32xf32>
    %14 = arith.addf %8, %13 : vector<16x32xf32>
    %c2 = arith.constant 2 : index
    %c0_9 = arith.constant 0 : index
    %15 = vector.load %arg3[%c2, %c0_9] : memref<4x32xf32, #tpu.memory_space<vmem>>, vector<1x32xf32>
    %16 = vector.broadcast %15 : vector<1x32xf32> to vector<16x32xf32>
    %17 = arith.addf %8, %16 : vector<16x32xf32>
    %c3 = arith.constant 3 : index
    %c0_10 = arith.constant 0 : index
    %18 = vector.load %arg3[%c3, %c0_10] : memref<4x32xf32, #tpu.memory_space<vmem>>, vector<1x32xf32>
    %19 = vector.broadcast %18 : vector<1x32xf32> to vector<16x32xf32>
    %20 = arith.addf %8, %19 : vector<16x32xf32>
    %21 = tpu.concatenate %11, %14, %17, %20 in 0 : vector<16x32xf32>, vector<16x32xf32>, vector<16x32xf32>, vector<16x32xf32> -> vector<64x32xf32>
    %22 = math.tanh %21 : vector<64x32xf32>
    %c0_11 = arith.constant 0 : index
    %c0_12 = arith.constant 0 : index
    %23 = vector.load %arg5[%c0_11, %c0_12] : memref<32x4xf32, #tpu.memory_space<vmem>>, vector<32x4xf32>
    %cst_13 = arith.constant dense<0.000000e+00> : vector<64x4xf32>
    %24 = tpu.matmul %22, %23, %cst_13 {dimension_numbers = #tpu.dot_dimension_numbers<[1], [0], [0], [1], [0, 0, 1, 1], [], []>} : vector<64x32xf32>, vector<32x4xf32>, vector<64x4xf32> -> vector<64x4xf32>
    %c0_14 = arith.constant 0 : index
    %c0_15 = arith.constant 0 : index
    %25 = vector.load %arg6[%c0_14, %c0_15] : memref<1x4xf32, #tpu.memory_space<vmem>>, vector<1x4xf32>
    %26 = vector.broadcast %25 : vector<1x4xf32> to vector<64x4xf32>
    %27 = arith.addf %24, %26 : vector<64x4xf32>
    %28 = tpu.iota {dimensions = array<i32: 1>} : vector<16x4xi32>
    %29 = vector.extract_strided_slice %27 {offsets = [0, 0], sizes = [16, 4], strides = [1, 1]} : vector<64x4xf32> to vector<16x4xf32>
    %cst_16 = arith.constant dense<0xFF800000> : vector<16xf32>
    %30 = vector.multi_reduction <maximumf>, %29, %cst_16 [1] : vector<16x4xf32> to vector<16xf32>
    %31 = vector.shape_cast %30 : vector<16xf32> to vector<16x1xf32>
    %32 = vector.broadcast %31 : vector<16x1xf32> to vector<16x4xf32>
    %33 = arith.cmpf oeq, %29, %32 : vector<16x4xf32>
    %c4_i32 = arith.constant 4 : i32
    %34 = vector.broadcast %c4_i32 : i32 to vector<16x4xi32>
    %35 = arith.select %33, %28, %34 : vector<16x4xi1>, vector<16x4xi32>
    %cst_17 = arith.constant dense<2147483647> : vector<16xi32>
    %36 = vector.multi_reduction <minsi>, %35, %cst_17 [1] : vector<16x4xi32> to vector<16xi32>
    %37 = vector.shape_cast %36 : vector<16xi32> to vector<16x1xi32>
    %38 = vector.broadcast %37 : vector<16x1xi32> to vector<16x4xi32>
    %39 = arith.cmpi eq, %38, %28 : vector<16x4xi32>
    %40 = arith.extui %39 : vector<16x4xi1> to vector<16x4xi32>
    %41 = arith.sitofp %40 : vector<16x4xi32> to vector<16x4xf32>
    %42 = vector.extract_strided_slice %27 {offsets = [16, 0], sizes = [16, 4], strides = [1, 1]} : vector<64x4xf32> to vector<16x4xf32>
    %cst_18 = arith.constant dense<0xFF800000> : vector<16xf32>
    %43 = vector.multi_reduction <maximumf>, %42, %cst_18 [1] : vector<16x4xf32> to vector<16xf32>
    %44 = vector.shape_cast %43 : vector<16xf32> to vector<16x1xf32>
    %45 = vector.broadcast %44 : vector<16x1xf32> to vector<16x4xf32>
    %46 = arith.cmpf oeq, %42, %45 : vector<16x4xf32>
    %c4_i32_19 = arith.constant 4 : i32
    %47 = vector.broadcast %c4_i32_19 : i32 to vector<16x4xi32>
    %48 = arith.select %46, %28, %47 : vector<16x4xi1>, vector<16x4xi32>
    %cst_20 = arith.constant dense<2147483647> : vector<16xi32>
    %49 = vector.multi_reduction <minsi>, %48, %cst_20 [1] : vector<16x4xi32> to vector<16xi32>
    %50 = vector.shape_cast %49 : vector<16xi32> to vector<16x1xi32>
    %51 = vector.broadcast %50 : vector<16x1xi32> to vector<16x4xi32>
    %52 = arith.cmpi eq, %51, %28 : vector<16x4xi32>
    %53 = arith.extui %52 : vector<16x4xi1> to vector<16x4xi32>
    %54 = arith.sitofp %53 : vector<16x4xi32> to vector<16x4xf32>
    %55 = vector.extract_strided_slice %27 {offsets = [32, 0], sizes = [16, 4], strides = [1, 1]} : vector<64x4xf32> to vector<16x4xf32>
    %cst_21 = arith.constant dense<0xFF800000> : vector<16xf32>
    %56 = vector.multi_reduction <maximumf>, %55, %cst_21 [1] : vector<16x4xf32> to vector<16xf32>
    %57 = vector.shape_cast %56 : vector<16xf32> to vector<16x1xf32>
    %58 = vector.broadcast %57 : vector<16x1xf32> to vector<16x4xf32>
    %59 = arith.cmpf oeq, %55, %58 : vector<16x4xf32>
    %c4_i32_22 = arith.constant 4 : i32
    %60 = vector.broadcast %c4_i32_22 : i32 to vector<16x4xi32>
    %61 = arith.select %59, %28, %60 : vector<16x4xi1>, vector<16x4xi32>
    %cst_23 = arith.constant dense<2147483647> : vector<16xi32>
    %62 = vector.multi_reduction <minsi>, %61, %cst_23 [1] : vector<16x4xi32> to vector<16xi32>
    %63 = vector.shape_cast %62 : vector<16xi32> to vector<16x1xi32>
    %64 = vector.broadcast %63 : vector<16x1xi32> to vector<16x4xi32>
    %65 = arith.cmpi eq, %64, %28 : vector<16x4xi32>
    %66 = arith.extui %65 : vector<16x4xi1> to vector<16x4xi32>
    %67 = arith.sitofp %66 : vector<16x4xi32> to vector<16x4xf32>
    %68 = vector.extract_strided_slice %27 {offsets = [48, 0], sizes = [16, 4], strides = [1, 1]} : vector<64x4xf32> to vector<16x4xf32>
    %cst_24 = arith.constant dense<0xFF800000> : vector<16xf32>
    %69 = vector.multi_reduction <maximumf>, %68, %cst_24 [1] : vector<16x4xf32> to vector<16xf32>
    %70 = vector.shape_cast %69 : vector<16xf32> to vector<16x1xf32>
    %71 = vector.broadcast %70 : vector<16x1xf32> to vector<16x4xf32>
    %72 = arith.cmpf oeq, %68, %71 : vector<16x4xf32>
    %c4_i32_25 = arith.constant 4 : i32
    %73 = vector.broadcast %c4_i32_25 : i32 to vector<16x4xi32>
    %74 = arith.select %72, %28, %73 : vector<16x4xi1>, vector<16x4xi32>
    %cst_26 = arith.constant dense<2147483647> : vector<16xi32>
    %75 = vector.multi_reduction <minsi>, %74, %cst_26 [1] : vector<16x4xi32> to vector<16xi32>
    %76 = vector.shape_cast %75 : vector<16xi32> to vector<16x1xi32>
    %77 = vector.broadcast %76 : vector<16x1xi32> to vector<16x4xi32>
    %78 = arith.cmpi eq, %77, %28 : vector<16x4xi32>
    %79 = arith.extui %78 : vector<16x4xi1> to vector<16x4xi32>
    %80 = arith.sitofp %79 : vector<16x4xi32> to vector<16x4xf32>
    %81 = tpu.concatenate %41, %54, %67, %80 in 1 : vector<16x4xf32>, vector<16x4xf32>, vector<16x4xf32>, vector<16x4xf32> -> vector<16x16xf32>
    %c0_27 = arith.constant 0 : index
    %c0_28 = arith.constant 0 : index
    %82 = vector.load %arg9[%c0_27, %c0_28] : memref<16x16xf32, #tpu.memory_space<vmem>>, vector<16x16xf32>
    tpu.vector_store %arg9[%c0_27, %c0_28], %81 {strides = array<i32>} : memref<16x16xf32, #tpu.memory_space<vmem>>, vector<16x16xf32>,
    %83 = tpu.concatenate %29, %42, %55, %68 in 1 : vector<16x4xf32>, vector<16x4xf32>, vector<16x4xf32>, vector<16x4xf32> -> vector<16x16xf32>
    %c0_29 = arith.constant 0 : index
    %c0_30 = arith.constant 0 : index
    %84 = vector.load %arg10[%c0_29, %c0_30] : memref<16x16xf32, #tpu.memory_space<vmem>>, vector<16x16xf32>
    tpu.vector_store %arg10[%c0_29, %c0_30], %83 {strides = array<i32>} : memref<16x16xf32, #tpu.memory_space<vmem>>, vector<16x16xf32>,
    %c0_31 = arith.constant 0 : index
    %c0_32 = arith.constant 0 : index
    %85 = vector.load %arg12[%c0_31, %c0_32] : memref<2x4xf32, #tpu.memory_space<vmem>>, vector<2x4xf32>
    %c0_i32_33 = arith.constant 0 : i32
    %c2_i32 = arith.constant 2 : i32
    %86 = arith.muli %c0_i32_33, %c2_i32 : i32
    %87 = tpu.assume_multiple %86, 2 : i32
    %88 = arith.index_cast %87 : i32 to index
    %c0_34 = arith.constant 0 : index
    %89 = vector.load %arg11[%88, %c0_34] : memref<16x4xf32, #tpu.memory_space<vmem>>, vector<2x4xf32>
    tpu.vector_store %arg11[%88, %c0_34], %85 {strides = array<i32>} : memref<16x4xf32, #tpu.memory_space<vmem>>, vector<2x4xf32>,
    %90 = arith.index_cast %87 : i32 to index
    %c0_35 = arith.constant 0 : index
    %91 = vector.load %arg9[%90, %c0_35] : memref<16x16xf32, #tpu.memory_space<vmem>>, vector<2x16xf32>
    %92 = vector.extract_strided_slice %85 {offsets = [0, 0], sizes = [2, 1], strides = [1, 1]} : vector<2x4xf32> to vector<2x1xf32>
    %93 = vector.extract_strided_slice %91 {offsets = [0, 0], sizes = [2, 4], strides = [1, 1]} : vector<2x16xf32> to vector<2x4xf32>
    %94 = vector.broadcast %92 : vector<2x1xf32> to vector<2x4xf32>
    %95 = arith.mulf %94, %93 : vector<2x4xf32>
    %96 = vector.extract_strided_slice %85 {offsets = [0, 1], sizes = [2, 1], strides = [1, 1]} : vector<2x4xf32> to vector<2x1xf32>
    %97 = vector.extract_strided_slice %91 {offsets = [0, 4], sizes = [2, 4], strides = [1, 1]} : vector<2x16xf32> to vector<2x4xf32>
    %98 = vector.broadcast %96 : vector<2x1xf32> to vector<2x4xf32>
    %99 = arith.mulf %98, %97 : vector<2x4xf32>
    %100 = arith.addf %95, %99 : vector<2x4xf32>
    %101 = vector.extract_strided_slice %85 {offsets = [0, 2], sizes = [2, 1], strides = [1, 1]} : vector<2x4xf32> to vector<2x1xf32>
    %102 = vector.extract_strided_slice %91 {offsets = [0, 8], sizes = [2, 4], strides = [1, 1]} : vector<2x16xf32> to vector<2x4xf32>
    %103 = vector.broadcast %101 : vector<2x1xf32> to vector<2x4xf32>
    %104 = arith.mulf %103, %102 : vector<2x4xf32>
    %105 = arith.addf %100, %104 : vector<2x4xf32>
    %106 = vector.extract_strided_slice %85 {offsets = [0, 3], sizes = [2, 1], strides = [1, 1]} : vector<2x4xf32> to vector<2x1xf32>
    %107 = vector.extract_strided_slice %91 {offsets = [0, 12], sizes = [2, 4], strides = [1, 1]} : vector<2x16xf32> to vector<2x4xf32>
    %108 = vector.broadcast %106 : vector<2x1xf32> to vector<2x4xf32>
    %109 = arith.mulf %108, %107 : vector<2x4xf32>
    %110 = arith.addf %105, %109 : vector<2x4xf32>
    %c1_i32 = arith.constant 1 : i32
    %c2_i32_36 = arith.constant 2 : i32
    %111 = arith.muli %c1_i32, %c2_i32_36 : i32
    %112 = tpu.assume_multiple %111, 2 : i32
    %113 = arith.index_cast %112 : i32 to index
    %c0_37 = arith.constant 0 : index
    %114 = vector.load %arg11[%113, %c0_37] : memref<16x4xf32, #tpu.memory_space<vmem>>, vector<2x4xf32>
    tpu.vector_store %arg11[%113, %c0_37], %110 {strides = array<i32>} : memref<16x4xf32, #tpu.memory_space<vmem>>, vector<2x4xf32>,
    %115 = arith.index_cast %112 : i32 to index
    %c0_38 = arith.constant 0 : index
    %116 = vector.load %arg9[%115, %c0_38] : memref<16x16xf32, #tpu.memory_space<vmem>>, vector<2x16xf32>
    %117 = vector.extract_strided_slice %110 {offsets = [0, 0], sizes = [2, 1], strides = [1, 1]} : vector<2x4xf32> to vector<2x1xf32>
    %118 = vector.extract_strided_slice %116 {offsets = [0, 0], sizes = [2, 4], strides = [1, 1]} : vector<2x16xf32> to vector<2x4xf32>
    %119 = vector.broadcast %117 : vector<2x1xf32> to vector<2x4xf32>
    %120 = arith.mulf %119, %118 : vector<2x4xf32>
    %121 = vector.extract_strided_slice %110 {offsets = [0, 1], sizes = [2, 1], strides = [1, 1]} : vector<2x4xf32> to vector<2x1xf32>
    %122 = vector.extract_strided_slice %116 {offsets = [0, 4], sizes = [2, 4], strides = [1, 1]} : vector<2x16xf32> to vector<2x4xf32>
    %123 = vector.broadcast %121 : vector<2x1xf32> to vector<2x4xf32>
    %124 = arith.mulf %123, %122 : vector<2x4xf32>
    %125 = arith.addf %120, %124 : vector<2x4xf32>
    %126 = vector.extract_strided_slice %110 {offsets = [0, 2], sizes = [2, 1], strides = [1, 1]} : vector<2x4xf32> to vector<2x1xf32>
    %127 = vector.extract_strided_slice %116 {offsets = [0, 8], sizes = [2, 4], strides = [1, 1]} : vector<2x16xf32> to vector<2x4xf32>
    %128 = vector.broadcast %126 : vector<2x1xf32> to vector<2x4xf32>
    %129 = arith.mulf %128, %127 : vector<2x4xf32>
    %130 = arith.addf %125, %129 : vector<2x4xf32>
    %131 = vector.extract_strided_slice %110 {offsets = [0, 3], sizes = [2, 1], strides = [1, 1]} : vector<2x4xf32> to vector<2x1xf32>
    %132 = vector.extract_strided_slice %116 {offsets = [0, 12], sizes = [2, 4], strides = [1, 1]} : vector<2x16xf32> to vector<2x4xf32>
    %133 = vector.broadcast %131 : vector<2x1xf32> to vector<2x4xf32>
    %134 = arith.mulf %133, %132 : vector<2x4xf32>
    %135 = arith.addf %130, %134 : vector<2x4xf32>
    %c2_i32_39 = arith.constant 2 : i32
    %c2_i32_40 = arith.constant 2 : i32
    %136 = arith.muli %c2_i32_39, %c2_i32_40 : i32
    %137 = tpu.assume_multiple %136, 2 : i32
    %138 = arith.index_cast %137 : i32 to index
    %c0_41 = arith.constant 0 : index
    %139 = vector.load %arg11[%138, %c0_41] : memref<16x4xf32, #tpu.memory_space<vmem>>, vector<2x4xf32>
    tpu.vector_store %arg11[%138, %c0_41], %135 {strides = array<i32>} : memref<16x4xf32, #tpu.memory_space<vmem>>, vector<2x4xf32>,
    %140 = arith.index_cast %137 : i32 to index
    %c0_42 = arith.constant 0 : index
    %141 = vector.load %arg9[%140, %c0_42] : memref<16x16xf32, #tpu.memory_space<vmem>>, vector<2x16xf32>
    %142 = vector.extract_strided_slice %135 {offsets = [0, 0], sizes = [2, 1], strides = [1, 1]} : vector<2x4xf32> to vector<2x1xf32>
    %143 = vector.extract_strided_slice %141 {offsets = [0, 0], sizes = [2, 4], strides = [1, 1]} : vector<2x16xf32> to vector<2x4xf32>
    %144 = vector.broadcast %142 : vector<2x1xf32> to vector<2x4xf32>
    %145 = arith.mulf %144, %143 : vector<2x4xf32>
    %146 = vector.extract_strided_slice %135 {offsets = [0, 1], sizes = [2, 1], strides = [1, 1]} : vector<2x4xf32> to vector<2x1xf32>
    %147 = vector.extract_strided_slice %141 {offsets = [0, 4], sizes = [2, 4], strides = [1, 1]} : vector<2x16xf32> to vector<2x4xf32>
    %148 = vector.broadcast %146 : vector<2x1xf32> to vector<2x4xf32>
    %149 = arith.mulf %148, %147 : vector<2x4xf32>
    %150 = arith.addf %145, %149 : vector<2x4xf32>
    %151 = vector.extract_strided_slice %135 {offsets = [0, 2], sizes = [2, 1], strides = [1, 1]} : vector<2x4xf32> to vector<2x1xf32>
    %152 = vector.extract_strided_slice %141 {offsets = [0, 8], sizes = [2, 4], strides = [1, 1]} : vector<2x16xf32> to vector<2x4xf32>
    %153 = vector.broadcast %151 : vector<2x1xf32> to vector<2x4xf32>
    %154 = arith.mulf %153, %152 : vector<2x4xf32>
    %155 = arith.addf %150, %154 : vector<2x4xf32>
    %156 = vector.extract_strided_slice %135 {offsets = [0, 3], sizes = [2, 1], strides = [1, 1]} : vector<2x4xf32> to vector<2x1xf32>
    %157 = vector.extract_strided_slice %141 {offsets = [0, 12], sizes = [2, 4], strides = [1, 1]} : vector<2x16xf32> to vector<2x4xf32>
    %158 = vector.broadcast %156 : vector<2x1xf32> to vector<2x4xf32>
    %159 = arith.mulf %158, %157 : vector<2x4xf32>
    %160 = arith.addf %155, %159 : vector<2x4xf32>
    %c3_i32 = arith.constant 3 : i32
    %c2_i32_43 = arith.constant 2 : i32
    %161 = arith.muli %c3_i32, %c2_i32_43 : i32
    %162 = tpu.assume_multiple %161, 2 : i32
    %163 = arith.index_cast %162 : i32 to index
    %c0_44 = arith.constant 0 : index
    %164 = vector.load %arg11[%163, %c0_44] : memref<16x4xf32, #tpu.memory_space<vmem>>, vector<2x4xf32>
    tpu.vector_store %arg11[%163, %c0_44], %160 {strides = array<i32>} : memref<16x4xf32, #tpu.memory_space<vmem>>, vector<2x4xf32>,
    %165 = arith.index_cast %162 : i32 to index
    %c0_45 = arith.constant 0 : index
    %166 = vector.load %arg9[%165, %c0_45] : memref<16x16xf32, #tpu.memory_space<vmem>>, vector<2x16xf32>
    %167 = vector.extract_strided_slice %160 {offsets = [0, 0], sizes = [2, 1], strides = [1, 1]} : vector<2x4xf32> to vector<2x1xf32>
    %168 = vector.extract_strided_slice %166 {offsets = [0, 0], sizes = [2, 4], strides = [1, 1]} : vector<2x16xf32> to vector<2x4xf32>
    %169 = vector.broadcast %167 : vector<2x1xf32> to vector<2x4xf32>
    %170 = arith.mulf %169, %168 : vector<2x4xf32>
    %171 = vector.extract_strided_slice %160 {offsets = [0, 1], sizes = [2, 1], strides = [1, 1]} : vector<2x4xf32> to vector<2x1xf32>
    %172 = vector.extract_strided_slice %166 {offsets = [0, 4], sizes = [2, 4], strides = [1, 1]} : vector<2x16xf32> to vector<2x4xf32>
    %173 = vector.broadcast %171 : vector<2x1xf32> to vector<2x4xf32>
    %174 = arith.mulf %173, %172 : vector<2x4xf32>
    %175 = arith.addf %170, %174 : vector<2x4xf32>
    %176 = vector.extract_strided_slice %160 {offsets = [0, 2], sizes = [2, 1], strides = [1, 1]} : vector<2x4xf32> to vector<2x1xf32>
    %177 = vector.extract_strided_slice %166 {offsets = [0, 8], sizes = [2, 4], strides = [1, 1]} : vector<2x16xf32> to vector<2x4xf32>
    %178 = vector.broadcast %176 : vector<2x1xf32> to vector<2x4xf32>
    %179 = arith.mulf %178, %177 : vector<2x4xf32>
    %180 = arith.addf %175, %179 : vector<2x4xf32>
    %181 = vector.extract_strided_slice %160 {offsets = [0, 3], sizes = [2, 1], strides = [1, 1]} : vector<2x4xf32> to vector<2x1xf32>
    %182 = vector.extract_strided_slice %166 {offsets = [0, 12], sizes = [2, 4], strides = [1, 1]} : vector<2x16xf32> to vector<2x4xf32>
    %183 = vector.broadcast %181 : vector<2x1xf32> to vector<2x4xf32>
    %184 = arith.mulf %183, %182 : vector<2x4xf32>
    %185 = arith.addf %180, %184 : vector<2x4xf32>
    %c4_i32_46 = arith.constant 4 : i32
    %c2_i32_47 = arith.constant 2 : i32
    %186 = arith.muli %c4_i32_46, %c2_i32_47 : i32
    %187 = tpu.assume_multiple %186, 2 : i32
    %188 = arith.index_cast %187 : i32 to index
    %c0_48 = arith.constant 0 : index
    %189 = vector.load %arg11[%188, %c0_48] : memref<16x4xf32, #tpu.memory_space<vmem>>, vector<2x4xf32>
    tpu.vector_store %arg11[%188, %c0_48], %185 {strides = array<i32>} : memref<16x4xf32, #tpu.memory_space<vmem>>, vector<2x4xf32>,
    %190 = arith.index_cast %187 : i32 to index
    %c0_49 = arith.constant 0 : index
    %191 = vector.load %arg9[%190, %c0_49] : memref<16x16xf32, #tpu.memory_space<vmem>>, vector<2x16xf32>
    %192 = vector.extract_strided_slice %185 {offsets = [0, 0], sizes = [2, 1], strides = [1, 1]} : vector<2x4xf32> to vector<2x1xf32>
    %193 = vector.extract_strided_slice %191 {offsets = [0, 0], sizes = [2, 4], strides = [1, 1]} : vector<2x16xf32> to vector<2x4xf32>
    %194 = vector.broadcast %192 : vector<2x1xf32> to vector<2x4xf32>
    %195 = arith.mulf %194, %193 : vector<2x4xf32>
    %196 = vector.extract_strided_slice %185 {offsets = [0, 1], sizes = [2, 1], strides = [1, 1]} : vector<2x4xf32> to vector<2x1xf32>
    %197 = vector.extract_strided_slice %191 {offsets = [0, 4], sizes = [2, 4], strides = [1, 1]} : vector<2x16xf32> to vector<2x4xf32>
    %198 = vector.broadcast %196 : vector<2x1xf32> to vector<2x4xf32>
    %199 = arith.mulf %198, %197 : vector<2x4xf32>
    %200 = arith.addf %195, %199 : vector<2x4xf32>
    %201 = vector.extract_strided_slice %185 {offsets = [0, 2], sizes = [2, 1], strides = [1, 1]} : vector<2x4xf32> to vector<2x1xf32>
    %202 = vector.extract_strided_slice %191 {offsets = [0, 8], sizes = [2, 4], strides = [1, 1]} : vector<2x16xf32> to vector<2x4xf32>
    %203 = vector.broadcast %201 : vector<2x1xf32> to vector<2x4xf32>
    %204 = arith.mulf %203, %202 : vector<2x4xf32>
    %205 = arith.addf %200, %204 : vector<2x4xf32>
    %206 = vector.extract_strided_slice %185 {offsets = [0, 3], sizes = [2, 1], strides = [1, 1]} : vector<2x4xf32> to vector<2x1xf32>
    %207 = vector.extract_strided_slice %191 {offsets = [0, 12], sizes = [2, 4], strides = [1, 1]} : vector<2x16xf32> to vector<2x4xf32>
    %208 = vector.broadcast %206 : vector<2x1xf32> to vector<2x4xf32>
    %209 = arith.mulf %208, %207 : vector<2x4xf32>
    %210 = arith.addf %205, %209 : vector<2x4xf32>
    %c5_i32 = arith.constant 5 : i32
    %c2_i32_50 = arith.constant 2 : i32
    %211 = arith.muli %c5_i32, %c2_i32_50 : i32
    %212 = tpu.assume_multiple %211, 2 : i32
    %213 = arith.index_cast %212 : i32 to index
    %c0_51 = arith.constant 0 : index
    %214 = vector.load %arg11[%213, %c0_51] : memref<16x4xf32, #tpu.memory_space<vmem>>, vector<2x4xf32>
    tpu.vector_store %arg11[%213, %c0_51], %210 {strides = array<i32>} : memref<16x4xf32, #tpu.memory_space<vmem>>, vector<2x4xf32>,
    %215 = arith.index_cast %212 : i32 to index
    %c0_52 = arith.constant 0 : index
    %216 = vector.load %arg9[%215, %c0_52] : memref<16x16xf32, #tpu.memory_space<vmem>>, vector<2x16xf32>
    %217 = vector.extract_strided_slice %210 {offsets = [0, 0], sizes = [2, 1], strides = [1, 1]} : vector<2x4xf32> to vector<2x1xf32>
    %218 = vector.extract_strided_slice %216 {offsets = [0, 0], sizes = [2, 4], strides = [1, 1]} : vector<2x16xf32> to vector<2x4xf32>
    %219 = vector.broadcast %217 : vector<2x1xf32> to vector<2x4xf32>
    %220 = arith.mulf %219, %218 : vector<2x4xf32>
    %221 = vector.extract_strided_slice %210 {offsets = [0, 1], sizes = [2, 1], strides = [1, 1]} : vector<2x4xf32> to vector<2x1xf32>
    %222 = vector.extract_strided_slice %216 {offsets = [0, 4], sizes = [2, 4], strides = [1, 1]} : vector<2x16xf32> to vector<2x4xf32>
    %223 = vector.broadcast %221 : vector<2x1xf32> to vector<2x4xf32>
    %224 = arith.mulf %223, %222 : vector<2x4xf32>
    %225 = arith.addf %220, %224 : vector<2x4xf32>
    %226 = vector.extract_strided_slice %210 {offsets = [0, 2], sizes = [2, 1], strides = [1, 1]} : vector<2x4xf32> to vector<2x1xf32>
    %227 = vector.extract_strided_slice %216 {offsets = [0, 8], sizes = [2, 4], strides = [1, 1]} : vector<2x16xf32> to vector<2x4xf32>
    %228 = vector.broadcast %226 : vector<2x1xf32> to vector<2x4xf32>
    %229 = arith.mulf %228, %227 : vector<2x4xf32>
    %230 = arith.addf %225, %229 : vector<2x4xf32>
    %231 = vector.extract_strided_slice %210 {offsets = [0, 3], sizes = [2, 1], strides = [1, 1]} : vector<2x4xf32> to vector<2x1xf32>
    %232 = vector.extract_strided_slice %216 {offsets = [0, 12], sizes = [2, 4], strides = [1, 1]} : vector<2x16xf32> to vector<2x4xf32>
    %233 = vector.broadcast %231 : vector<2x1xf32> to vector<2x4xf32>
    %234 = arith.mulf %233, %232 : vector<2x4xf32>
    %235 = arith.addf %230, %234 : vector<2x4xf32>
    %c6_i32 = arith.constant 6 : i32
    %c2_i32_53 = arith.constant 2 : i32
    %236 = arith.muli %c6_i32, %c2_i32_53 : i32
    %237 = tpu.assume_multiple %236, 2 : i32
    %238 = arith.index_cast %237 : i32 to index
    %c0_54 = arith.constant 0 : index
    %239 = vector.load %arg11[%238, %c0_54] : memref<16x4xf32, #tpu.memory_space<vmem>>, vector<2x4xf32>
    tpu.vector_store %arg11[%238, %c0_54], %235 {strides = array<i32>} : memref<16x4xf32, #tpu.memory_space<vmem>>, vector<2x4xf32>,
    %240 = arith.index_cast %237 : i32 to index
    %c0_55 = arith.constant 0 : index
    %241 = vector.load %arg9[%240, %c0_55] : memref<16x16xf32, #tpu.memory_space<vmem>>, vector<2x16xf32>
    %242 = vector.extract_strided_slice %235 {offsets = [0, 0], sizes = [2, 1], strides = [1, 1]} : vector<2x4xf32> to vector<2x1xf32>
    %243 = vector.extract_strided_slice %241 {offsets = [0, 0], sizes = [2, 4], strides = [1, 1]} : vector<2x16xf32> to vector<2x4xf32>
    %244 = vector.broadcast %242 : vector<2x1xf32> to vector<2x4xf32>
    %245 = arith.mulf %244, %243 : vector<2x4xf32>
    %246 = vector.extract_strided_slice %235 {offsets = [0, 1], sizes = [2, 1], strides = [1, 1]} : vector<2x4xf32> to vector<2x1xf32>
    %247 = vector.extract_strided_slice %241 {offsets = [0, 4], sizes = [2, 4], strides = [1, 1]} : vector<2x16xf32> to vector<2x4xf32>
    %248 = vector.broadcast %246 : vector<2x1xf32> to vector<2x4xf32>
    %249 = arith.mulf %248, %247 : vector<2x4xf32>
    %250 = arith.addf %245, %249 : vector<2x4xf32>
    %251 = vector.extract_strided_slice %235 {offsets = [0, 2], sizes = [2, 1], strides = [1, 1]} : vector<2x4xf32> to vector<2x1xf32>
    %252 = vector.extract_strided_slice %241 {offsets = [0, 8], sizes = [2, 4], strides = [1, 1]} : vector<2x16xf32> to vector<2x4xf32>
    %253 = vector.broadcast %251 : vector<2x1xf32> to vector<2x4xf32>
    %254 = arith.mulf %253, %252 : vector<2x4xf32>
    %255 = arith.addf %250, %254 : vector<2x4xf32>
    %256 = vector.extract_strided_slice %235 {offsets = [0, 3], sizes = [2, 1], strides = [1, 1]} : vector<2x4xf32> to vector<2x1xf32>
    %257 = vector.extract_strided_slice %241 {offsets = [0, 12], sizes = [2, 4], strides = [1, 1]} : vector<2x16xf32> to vector<2x4xf32>
    %258 = vector.broadcast %256 : vector<2x1xf32> to vector<2x4xf32>
    %259 = arith.mulf %258, %257 : vector<2x4xf32>
    %260 = arith.addf %255, %259 : vector<2x4xf32>
    %c7_i32 = arith.constant 7 : i32
    %c2_i32_56 = arith.constant 2 : i32
    %261 = arith.muli %c7_i32, %c2_i32_56 : i32
    %262 = tpu.assume_multiple %261, 2 : i32
    %263 = arith.index_cast %262 : i32 to index
    %c0_57 = arith.constant 0 : index
    %264 = vector.load %arg11[%263, %c0_57] : memref<16x4xf32, #tpu.memory_space<vmem>>, vector<2x4xf32>
    tpu.vector_store %arg11[%263, %c0_57], %260 {strides = array<i32>} : memref<16x4xf32, #tpu.memory_space<vmem>>, vector<2x4xf32>,
    %265 = arith.index_cast %262 : i32 to index
    %c0_58 = arith.constant 0 : index
    %266 = vector.load %arg9[%265, %c0_58] : memref<16x16xf32, #tpu.memory_space<vmem>>, vector<2x16xf32>
    %267 = vector.extract_strided_slice %260 {offsets = [0, 0], sizes = [2, 1], strides = [1, 1]} : vector<2x4xf32> to vector<2x1xf32>
    %268 = vector.extract_strided_slice %266 {offsets = [0, 0], sizes = [2, 4], strides = [1, 1]} : vector<2x16xf32> to vector<2x4xf32>
    %269 = vector.broadcast %267 : vector<2x1xf32> to vector<2x4xf32>
    %270 = arith.mulf %269, %268 : vector<2x4xf32>
    %271 = vector.extract_strided_slice %260 {offsets = [0, 1], sizes = [2, 1], strides = [1, 1]} : vector<2x4xf32> to vector<2x1xf32>
    %272 = vector.extract_strided_slice %266 {offsets = [0, 4], sizes = [2, 4], strides = [1, 1]} : vector<2x16xf32> to vector<2x4xf32>
    %273 = vector.broadcast %271 : vector<2x1xf32> to vector<2x4xf32>
    %274 = arith.mulf %273, %272 : vector<2x4xf32>
    %275 = arith.addf %270, %274 : vector<2x4xf32>
    %276 = vector.extract_strided_slice %260 {offsets = [0, 2], sizes = [2, 1], strides = [1, 1]} : vector<2x4xf32> to vector<2x1xf32>
    %277 = vector.extract_strided_slice %266 {offsets = [0, 8], sizes = [2, 4], strides = [1, 1]} : vector<2x16xf32> to vector<2x4xf32>
    %278 = vector.broadcast %276 : vector<2x1xf32> to vector<2x4xf32>
    %279 = arith.mulf %278, %277 : vector<2x4xf32>
    %280 = arith.addf %275, %279 : vector<2x4xf32>
    %281 = vector.extract_strided_slice %260 {offsets = [0, 3], sizes = [2, 1], strides = [1, 1]} : vector<2x4xf32> to vector<2x1xf32>
    %282 = vector.extract_strided_slice %266 {offsets = [0, 12], sizes = [2, 4], strides = [1, 1]} : vector<2x16xf32> to vector<2x4xf32>
    %283 = vector.broadcast %281 : vector<2x1xf32> to vector<2x4xf32>
    %284 = arith.mulf %283, %282 : vector<2x4xf32>
    %285 = arith.addf %280, %284 : vector<2x4xf32>
    %c8_i32 = arith.constant 8 : i32
    %c0_59 = arith.constant 0 : index
    %c0_60 = arith.constant 0 : index
    %286 = vector.load %arg12[%c0_59, %c0_60] : memref<2x4xf32, #tpu.memory_space<vmem>>, vector<2x4xf32>
    tpu.vector_store %arg12[%c0_59, %c0_60], %285 {strides = array<i32>} : memref<2x4xf32, #tpu.memory_space<vmem>>, vector<2x4xf32>,
    %c0_61 = arith.constant 0 : index
    %c0_62 = arith.constant 0 : index
    %287 = vector.load %arg11[%c0_61, %c0_62] : memref<16x4xf32, #tpu.memory_space<vmem>>, vector<16x4xf32>
    %c0_63 = arith.constant 0 : index
    %c0_64 = arith.constant 0 : index
    %288 = vector.load %arg10[%c0_63, %c0_64] : memref<16x16xf32, #tpu.memory_space<vmem>>, vector<16x16xf32>
    %289 = vector.extract_strided_slice %287 {offsets = [0, 0], sizes = [16, 1], strides = [1, 1]} : vector<16x4xf32> to vector<16x1xf32>
    %290 = vector.extract_strided_slice %288 {offsets = [0, 0], sizes = [16, 4], strides = [1, 1]} : vector<16x16xf32> to vector<16x4xf32>
    %291 = vector.broadcast %289 : vector<16x1xf32> to vector<16x4xf32>
    %292 = arith.mulf %291, %290 : vector<16x4xf32>
    %293 = vector.extract_strided_slice %287 {offsets = [0, 1], sizes = [16, 1], strides = [1, 1]} : vector<16x4xf32> to vector<16x1xf32>
    %294 = vector.extract_strided_slice %288 {offsets = [0, 4], sizes = [16, 4], strides = [1, 1]} : vector<16x16xf32> to vector<16x4xf32>
    %295 = vector.broadcast %293 : vector<16x1xf32> to vector<16x4xf32>
    %296 = arith.mulf %295, %294 : vector<16x4xf32>
    %297 = arith.addf %292, %296 : vector<16x4xf32>
    %298 = vector.extract_strided_slice %287 {offsets = [0, 2], sizes = [16, 1], strides = [1, 1]} : vector<16x4xf32> to vector<16x1xf32>
    %299 = vector.extract_strided_slice %288 {offsets = [0, 8], sizes = [16, 4], strides = [1, 1]} : vector<16x16xf32> to vector<16x4xf32>
    %300 = vector.broadcast %298 : vector<16x1xf32> to vector<16x4xf32>
    %301 = arith.mulf %300, %299 : vector<16x4xf32>
    %302 = arith.addf %297, %301 : vector<16x4xf32>
    %303 = vector.extract_strided_slice %287 {offsets = [0, 3], sizes = [16, 1], strides = [1, 1]} : vector<16x4xf32> to vector<16x1xf32>
    %304 = vector.extract_strided_slice %288 {offsets = [0, 12], sizes = [16, 4], strides = [1, 1]} : vector<16x16xf32> to vector<16x4xf32>
    %305 = vector.broadcast %303 : vector<16x1xf32> to vector<16x4xf32>
    %306 = arith.mulf %305, %304 : vector<16x4xf32>
    %307 = arith.addf %302, %306 : vector<16x4xf32>
    %c0_65 = arith.constant 0 : index
    %c0_66 = arith.constant 0 : index
    %308 = vector.load %arg7[%c0_65, %c0_66] : memref<16x4xf32, #tpu.memory_space<vmem>>, vector<16x4xf32>
    tpu.vector_store %arg7[%c0_65, %c0_66], %307 {strides = array<i32>} : memref<16x4xf32, #tpu.memory_space<vmem>>, vector<16x4xf32>,
    %cst_67 = arith.constant dense<0xFF800000> : vector<16xf32>
    %309 = vector.multi_reduction <maximumf>, %307, %cst_67 [1] : vector<16x4xf32> to vector<16xf32>
    %310 = vector.shape_cast %309 : vector<16xf32> to vector<16x1xf32>
    %311 = vector.broadcast %310 : vector<16x1xf32> to vector<16x4xf32>
    %312 = arith.cmpf oeq, %307, %311 : vector<16x4xf32>
    %c4_i32_68 = arith.constant 4 : i32
    %313 = vector.broadcast %c4_i32_68 : i32 to vector<16x4xi32>
    %314 = arith.select %312, %28, %313 : vector<16x4xi1>, vector<16x4xi32>
    %cst_69 = arith.constant dense<2147483647> : vector<16xi32>
    %315 = vector.multi_reduction <minsi>, %314, %cst_69 [1] : vector<16x4xi32> to vector<16xi32>
    %316 = vector.shape_cast %315 : vector<16xi32> to vector<16x1xi32>
    %c0_70 = arith.constant 0 : index
    %c0_71 = arith.constant 0 : index
    %317 = vector.load %arg8[%c0_70, %c0_71] : memref<16x1xi32, #tpu.memory_space<vmem>>, vector<16x1xi32>
    tpu.vector_store %arg8[%c0_70, %c0_71], %316 {strides = array<i32>} : memref<16x1xi32, #tpu.memory_space<vmem>>, vector<16x1xi32>,
    return
  }
  func.func @transform_0(%arg0: i32) -> (i32, i32) {
    %c0_i32 = arith.constant 0 : i32
    %c0_i32_0 = arith.constant 0 : i32
    return %arg0, %c0_i32 : i32, i32
  }
  func.func @transform_1(%arg0: i32) -> (i32, i32) {
    %c0_i32 = arith.constant 0 : i32
    %c0_i32_0 = arith.constant 0 : i32
    %c0_i32_1 = arith.constant 0 : i32
    return %c0_i32, %c0_i32_0 : i32, i32
  }
  func.func @transform_2(%arg0: i32) -> (i32, i32) {
    %c0_i32 = arith.constant 0 : i32
    %c0_i32_0 = arith.constant 0 : i32
    %c0_i32_1 = arith.constant 0 : i32
    return %c0_i32, %c0_i32_0 : i32, i32
  }
  func.func @transform_3(%arg0: i32) -> (i32, i32) {
    %c0_i32 = arith.constant 0 : i32
    %c0_i32_0 = arith.constant 0 : i32
    %c0_i32_1 = arith.constant 0 : i32
    return %c0_i32, %c0_i32_0 : i32, i32
  }
  func.func @transform_4(%arg0: i32) -> (i32, i32) {
    %c0_i32 = arith.constant 0 : i32
    %c0_i32_0 = arith.constant 0 : i32
    %c0_i32_1 = arith.constant 0 : i32
    return %c0_i32, %c0_i32_0 : i32, i32
  }
  func.func @transform_5(%arg0: i32) -> (i32, i32) {
    %c0_i32 = arith.constant 0 : i32
    %c0_i32_0 = arith.constant 0 : i32
    %c0_i32_1 = arith.constant 0 : i32
    return %c0_i32, %c0_i32_0 : i32, i32
  }
  func.func @transform_6(%arg0: i32) -> (i32, i32) {
    %c0_i32 = arith.constant 0 : i32
    %c0_i32_0 = arith.constant 0 : i32
    return %arg0, %c0_i32 : i32, i32
  }
  func.func @transform_7(%arg0: i32) -> (i32, i32) {
    %c0_i32 = arith.constant 0 : i32
    %c0_i32_0 = arith.constant 0 : i32
    return %arg0, %c0_i32 : i32, i32
  }
}

</mosaic_0001>

<llo_original>
// kernel: tpu_custom_call.1
$region0: #{tpu_custom_call.1}
  #allocation0 [shape = 'u32[]', space=smem, size = 0x4, offset = 0x4, fixed_abs, tag = 'smem constant byte address 0x4 - core index']
  #allocation1 [shape = 'u32[144,128]{1,0:T(1,128)}', space=vmem, size = 0x12000, scoped, tag = 'internal scratch']
  #allocation2 [shape = 'f32[16,16]{1,0:T(8,128)}', space=vmem, size = 0x2000, scoped, tag = 'scratch operand']
  #allocation3 [shape = 'f32[16,16]{1,0:T(8,128)}', space=vmem, size = 0x2000, scoped, tag = 'scratch operand']
  #allocation4 [shape = 'f32[16,4]{1,0:T(8,128)}', space=vmem, size = 0x2000, scoped, tag = 'scratch operand']
  #allocation5 [shape = 'f32[2,4]{1,0:T(2,128)}', space=vmem, size = 0x400, scoped, tag = 'scratch operand']
  %s0 = inlined_call_operand.vmem [shape: f32[32,32], index: 0, kind: input, shape index: {}]
  %s1 = inlined_call_operand.hbm [shape: f32[32,32], index: 1, kind: input, shape index: {}]
  %s2 = inlined_call_operand.vmem [shape: f32[4,32], index: 2, kind: input, shape index: {}]
  %s3 = inlined_call_operand.vmem [shape: f32[1,32], index: 3, kind: input, shape index: {}]
  %s4 = inlined_call_operand.vmem [shape: f32[32,4], index: 4, kind: input, shape index: {}]
  %s5 = inlined_call_operand.vmem [shape: f32[1,4], index: 5, kind: input, shape index: {}]
  %s6 = inlined_call_operand.vmem [shape: f32[32,4], index: 6, kind: output, shape index: {0}]
  %s7 = inlined_call_operand.vmem [shape: s32[32,1], index: 7, kind: output, shape index: {1}]
  %8 = xla_tuple %s6, %s7
  %s9 = sld [smem:[#allocation0]]
  $region73: #{tpu_custom_call.1} parent=0
    _
  %s11 = ssub.s32 1, %s9
  %s12 = scalar_select 0, %s11, %s9
  $region1: #{tpu_custom_call.1} parent=0
    #allocation6 [shape = 'u8[16384]{0}', space=vmem, size = 0x4000, scoped, tag = 'input window, operand 1, single buffered']
    #allocation7 [shape = 's32[2]{0}', space=sflag, size = 0x8, scoped, tag = 'scoped memory for tpu_custom_call.1']
    %13 = vsyncpa [#allocation7], 0
    loop: start=0, step=1, limit=4
    $region2: #{tpu_custom_call.1} parent=1 // loop_pre_header
      _
    $region3: #{tpu_custom_call.1} parent=1 // loop_header
      %s15 = sphi 0, %s19
      %p16 = scmp.ge.s32.totalorder %s15, 4
      %s25 = sphi 0, %s27
      %s28 = sphi 0, %s25
      %s29 = sphi 0, %s28
      %s45 = sphi 0, %s29
      %s49 = sphi 0, %s49
      %s51 = sphi 0, %s49
      %s52 = sphi 0, %s51
      %s66 = sphi 0, %s52
      %s70 = sphi 0, %s70
      %s72 = sphi 0, %s70
      %s73 = sphi 0, %s72
      %s87 = sphi 0, %s73
      %s91 = sphi 0, %s91
      %s93 = sphi 0, %s91
      %s94 = sphi 0, %s93
      %s108 = sphi 0, %s94
      %s112 = sphi 0, %s112
      %s114 = sphi 0, %s112
      %s115 = sphi 0, %s114
      %s129 = sphi 0, %s115
      %s133 = sphi 0, %s133
      %s135 = sphi 0, %s133
      %s136 = sphi 0, %s135
      %s150 = sphi 0, %s136
      %s156 = sphi 0, %s158
      %s159 = sphi 0, %s156
      %s160 = sphi 0, %s159
      %s176 = sphi 0, %s160
      %s182 = sphi 0, %s184
      %s185 = sphi 0, %s182
      %s186 = sphi 0, %s185
      %s202 = sphi 0, %s186
    $region4: #{tpu_custom_call.1} parent=1 // loop_header_branch
      %18 = sbr.rel (%p16) target = $region8
    $region5: #{tpu_custom_call.1} parent=1 // loop_body
      %s20 = ssub.s32 %s15, 1
      %s21 = ssub.s32 %s15, 2
      %s22 = sadd.s32 %s15, 1
      %s23 = ssub.s32 %s15, %s22
      %p24 = scmp.eq.s32.totalorder %s23, 0
      %s26 = sadd.s32 %s25, 1
      %s27 = scalar_select %p24, %s25, %s26
      %p30 = pneg %p24
      %p31 = scmp.eq.s32.totalorder %s15, 1
      %p32 = por %p30, %p31
      %p33 = scmp.ne.s32.totalorder %s25, %s28
      %p34 = scmp.eq.s32.totalorder %s15, 0
      %p35 = por %p33, %p34
      %p36 = scmp.ne.s32.totalorder %s25, %s28
      %p37 = scmp.eq.s32.totalorder %s20, 1
      %p38 = por %p36, %p37
      %p39 = scmp.ne.s32.totalorder %s28, %s29
      %p40 = scmp.eq.s32.totalorder %s20, 0
      %p41 = por %p39, %p40
      %p42 = scmp.ne.s32.totalorder %s28, %s29
      %p43 = scmp.eq.s32.totalorder %s21, 1
      %p44 = por %p42, %p43
      %p46 = scmp.ne.s32.totalorder %s29, %s45
      %p47 = scmp.eq.s32.totalorder %s21, 0
      %p48 = por %p46, %p47
      %s50 = sadd.s32 %s49, 1
      %p53 = scmp.eq.s32.totalorder %s15, 1
      %p54 = scmp.ne.s32.totalorder %s49, %s51
      %p55 = scmp.eq.s32.totalorder %s15, 0
      %p56 = por %p54, %p55
      %p57 = scmp.ne.s32.totalorder %s49, %s51
      %p58 = scmp.eq.s32.totalorder %s20, 1
      %p59 = por %p57, %p58
      %p60 = scmp.ne.s32.totalorder %s51, %s52
      %p61 = scmp.eq.s32.totalorder %s20, 0
      %p62 = por %p60, %p61
      %p63 = scmp.ne.s32.totalorder %s51, %s52
      %p64 = scmp.eq.s32.totalorder %s21, 1
      %p65 = por %p63, %p64
      %p67 = scmp.ne.s32.totalorder %s52, %s66
      %p68 = scmp.eq.s32.totalorder %s21, 0
      %p69 = por %p67, %p68
      %s71 = sadd.s32 %s70, 1
      %p74 = scmp.eq.s32.totalorder %s15, 1
      %p75 = scmp.ne.s32.totalorder %s70, %s72
      %p76 = scmp.eq.s32.totalorder %s15, 0
      %p77 = por %p75, %p76
      %p78 = scmp.ne.s32.totalorder %s70, %s72
      %p79 = scmp.eq.s32.totalorder %s20, 1
      %p80 = por %p78, %p79
      %p81 = scmp.ne.s32.totalorder %s72, %s73
      %p82 = scmp.eq.s32.totalorder %s20, 0
      %p83 = por %p81, %p82
      %p84 = scmp.ne.s32.totalorder %s72, %s73
      %p85 = scmp.eq.s32.totalorder %s21, 1
      %p86 = por %p84, %p85
      %p88 = scmp.ne.s32.totalorder %s73, %s87
      %p89 = scmp.eq.s32.totalorder %s21, 0
      %p90 = por %p88, %p89
      %s92 = sadd.s32 %s91, 1
      %p95 = scmp.eq.s32.totalorder %s15, 1
      %p96 = scmp.ne.s32.totalorder %s91, %s93
      %p97 = scmp.eq.s32.totalorder %s15, 0
      %p98 = por %p96, %p97
      %p99 = scmp.ne.s32.totalorder %s91, %s93
      %p100 = scmp.eq.s32.totalorder %s20, 1
      %p101 = por %p99, %p100
      %p102 = scmp.ne.s32.totalorder %s93, %s94
      %p103 = scmp.eq.s32.totalorder %s20, 0
      %p104 = por %p102, %p103
      %p105 = scmp.ne.s32.totalorder %s93, %s94
      %p106 = scmp.eq.s32.totalorder %s21, 1
      %p107 = por %p105, %p106
      %p109 = scmp.ne.s32.totalorder %s94, %s108
      %p110 = scmp.eq.s32.totalorder %s21, 0
      %p111 = por %p109, %p110
      %s113 = sadd.s32 %s112, 1
      %p116 = scmp.eq.s32.totalorder %s15, 1
      %p117 = scmp.ne.s32.totalorder %s112, %s114
      %p118 = scmp.eq.s32.totalorder %s15, 0
      %p119 = por %p117, %p118
      %p120 = scmp.ne.s32.totalorder %s112, %s114
      %p121 = scmp.eq.s32.totalorder %s20, 1
      %p122 = por %p120, %p121
      %p123 = scmp.ne.s32.totalorder %s114, %s115
      %p124 = scmp.eq.s32.totalorder %s20, 0
      %p125 = por %p123, %p124
      %p126 = scmp.ne.s32.totalorder %s114, %s115
      %p127 = scmp.eq.s32.totalorder %s21, 1
      %p128 = por %p126, %p127
      %p130 = scmp.ne.s32.totalorder %s115, %s129
      %p131 = scmp.eq.s32.totalorder %s21, 0
      %p132 = por %p130, %p131
      %s134 = sadd.s32 %s133, 1
      %p137 = scmp.eq.s32.totalorder %s15, 1
      %p138 = scmp.ne.s32.totalorder %s133, %s135
      %p139 = scmp.eq.s32.totalorder %s15, 0
      %p140 = por %p138, %p139
      %p141 = scmp.ne.s32.totalorder %s133, %s135
      %p142 = scmp.eq.s32.totalorder %s20, 1
      %p143 = por %p141, %p142
      %p144 = scmp.ne.s32.totalorder %s135, %s136
      %p145 = scmp.eq.s32.totalorder %s20, 0
      %p146 = por %p144, %p145
      %p147 = scmp.ne.s32.totalorder %s135, %s136
      %p148 = scmp.eq.s32.totalorder %s21, 1
      %p149 = por %p147, %p148
      %p151 = scmp.ne.s32.totalorder %s136, %s150
      %p152 = scmp.eq.s32.totalorder %s21, 0
      %p153 = por %p151, %p152
      %s154 = ssub.s32 %s15, %s22
      %p155 = scmp.eq.s32.totalorder %s154, 0
      %s157 = sadd.s32 %s156, 1
      %s158 = scalar_select %p155, %s156, %s157
      %p161 = pneg %p155
      %p162 = scmp.eq.s32.totalorder %s15, 1
      %p163 = por %p161, %p162
      %p164 = scmp.ne.s32.totalorder %s156, %s159
      %p165 = scmp.eq.s32.totalorder %s15, 0
      %p166 = por %p164, %p165
      %p167 = scmp.ne.s32.totalorder %s156, %s159
      %p168 = scmp.eq.s32.totalorder %s20, 1
      %p169 = por %p167, %p168
      %p170 = scmp.ne.s32.totalorder %s159, %s160
      %p171 = scmp.eq.s32.totalorder %s20, 0
      %p172 = por %p170, %p171
      %p173 = scmp.ne.s32.totalorder %s159, %s160
      %p174 = scmp.eq.s32.totalorder %s21, 1
      %p175 = por %p173, %p174
      %p177 = scmp.ne.s32.totalorder %s160, %s176
      %p178 = scmp.eq.s32.totalorder %s21, 0
      %p179 = por %p177, %p178
      %s180 = ssub.s32 %s15, %s22
      %p181 = scmp.eq.s32.totalorder %s180, 0
      %s183 = sadd.s32 %s182, 1
      %s184 = scalar_select %p181, %s182, %s183
      %p187 = pneg %p181
      %p188 = scmp.eq.s32.totalorder %s15, 1
      %p189 = por %p187, %p188
      %p190 = scmp.ne.s32.totalorder %s182, %s185
      %p191 = scmp.eq.s32.totalorder %s15, 0
      %p192 = por %p190, %p191
      %p193 = scmp.ne.s32.totalorder %s182, %s185
      %p194 = scmp.eq.s32.totalorder %s20, 1
      %p195 = por %p193, %p194
      %p196 = scmp.ne.s32.totalorder %s185, %s186
      %p197 = scmp.eq.s32.totalorder %s20, 0
      %p198 = por %p196, %p197
      %p199 = scmp.ne.s32.totalorder %s185, %s186
      %p200 = scmp.eq.s32.totalorder %s21, 1
      %p201 = por %p199, %p200
      %p203 = scmp.ne.s32.totalorder %s186, %s202
      %p204 = scmp.eq.s32.totalorder %s21, 0
      %p205 = por %p203, %p204
      %p206 = scmp.le.s32.totalorder 1, %s15
      %p207 = scmp.lt.s32.totalorder %s15, 3
      %p208 = pnand %p206, %p207
      %p209 = pneg %p208
      // Predicated region
      $region9: #{tpu_custom_call.1} parent=5 // pred_check
        _
      $region10: #{tpu_custom_call.1} parent=5 // pred_check_branch
        %211 = sbr.rel (%p208) target = $region12
      $region11: #{tpu_custom_call.1} parent=5 // pred_region
        %s212 = ssub.s32 %s15, 1
        // Predicated region
        $region13: #{tpu_custom_call.1} parent=11 // pred_check
          %p213 = pneg %p62
        $region14: #{tpu_custom_call.1} parent=11 // pred_check_branch
          %215 = sbr.rel (%p213) target = $region16
        $region15: #{tpu_custom_call.1} parent=11 // pred_region
          %s217 = ssub.s32 512, 512
          %218 = vsyncadd [#allocation7], %s217
          %s219 = sshll.u32 [#allocation6], 4
          %s220 = int_to_ptr.vmem [resolvable:$true] %s219
          %225 = dma.hbm_to_vmem [thread:$0]  %s1, 512, %s220, [#allocation7], 128, 128, 8
        $region16: #{tpu_custom_call.1} parent=11 // pred_fallthru
          _
        // Predicated region
        $region17: #{tpu_custom_call.1} parent=11 // pred_check
          %p226 = pneg %p83
        $region18: #{tpu_custom_call.1} parent=11 // pred_check_branch
          %228 = sbr.rel (%p226) target = $region20
        $region19: #{tpu_custom_call.1} parent=11 // pred_region
          _
        $region20: #{tpu_custom_call.1} parent=11 // pred_fallthru
          _
        // Predicated region
        $region21: #{tpu_custom_call.1} parent=11 // pred_check
          %p229 = pneg %p104
        $region22: #{tpu_custom_call.1} parent=11 // pred_check_branch
          %231 = sbr.rel (%p229) target = $region24
        $region23: #{tpu_custom_call.1} parent=11 // pred_region
          _
        $region24: #{tpu_custom_call.1} parent=11 // pred_fallthru
          _
        // Predicated region
        $region25: #{tpu_custom_call.1} parent=11 // pred_check
          %p232 = pneg %p125
        $region26: #{tpu_custom_call.1} parent=11 // pred_check_branch
          %234 = sbr.rel (%p232) target = $region28
        $region27: #{tpu_custom_call.1} parent=11 // pred_region
          _
        $region28: #{tpu_custom_call.1} parent=11 // pred_fallthru
          _
        // Predicated region
        $region29: #{tpu_custom_call.1} parent=11 // pred_check
          %p235 = pneg %p146
        $region30: #{tpu_custom_call.1} parent=11 // pred_check_branch
          %237 = sbr.rel (%p235) target = $region32
        $region31: #{tpu_custom_call.1} parent=11 // pred_region
          _
        $region32: #{tpu_custom_call.1} parent=11 // pred_fallthru
          _
      $region12: #{tpu_custom_call.1} parent=5 // pred_fallthru
        _
      %p238 = scmp.lt.s32.totalorder %s15, 2
      // Predicated region
      $region33: #{tpu_custom_call.1} parent=5 // pred_check
        %p239 = pneg %p238
      $region34: #{tpu_custom_call.1} parent=5 // pred_check_branch
        %241 = sbr.rel (%p239) target = $region36
      $region35: #{tpu_custom_call.1} parent=5 // pred_region
        // Predicated region
        $region37: #{tpu_custom_call.1} parent=35 // pred_check
          %p242 = pneg %p35
        $region38: #{tpu_custom_call.1} parent=35 // pred_check_branch
          %244 = sbr.rel (%p242) target = $region40
        $region39: #{tpu_custom_call.1} parent=35 // pred_region
          %s245 = smul.u32 2, %s15
          %p246 = scmp.lt.s32.totalorder %s245, 3
          %s247 = scalar_select %p246, %s245, 3
          %s248 = smul.addr %s247, 8
          %s249 = scalar_lea.vmem %s0, %s248
          %s250 = smul.u32 2, %s15
        $region40: #{tpu_custom_call.1} parent=35 // pred_fallthru
          _
      $region36: #{tpu_custom_call.1} parent=5 // pred_fallthru
        _
      %p251 = scmp.le.s32.totalorder 1, %s15
      %p252 = scmp.lt.s32.totalorder %s15, 3
      %p253 = pnand %p251, %p252
      %p254 = pneg %p253
      // Predicated region
      $region41: #{tpu_custom_call.1} parent=5 // pred_check
        _
      $region42: #{tpu_custom_call.1} parent=5 // pred_check_branch
        %256 = sbr.rel (%p253) target = $region44
      $region43: #{tpu_custom_call.1} parent=5 // pred_region
        %s257 = ssub.s32 %s15, 1
        // Predicated region
        $region45: #{tpu_custom_call.1} parent=43 // pred_check
          %p258 = pneg %p62
        $region46: #{tpu_custom_call.1} parent=43 // pred_check_branch
          %260 = sbr.rel (%p258) target = $region48
        $region47: #{tpu_custom_call.1} parent=43 // pred_region
          %261 = dma.done [#allocation7], 512
        $region48: #{tpu_custom_call.1} parent=43 // pred_fallthru
          _
        %s262 = smul.u32 2, %s20
        %p263 = scmp.lt.s32.totalorder %s262, 3
        %s264 = scalar_select %p263, %s262, 3
        %s265 = smul.addr %s264, 8
        %s266 = scalar_lea.vmem %s0, %s265
        %p267 = pneg %p41
        %p268 = pneg %p38
        %p269 = pneg %p62
        %p270 = pneg %p59
        %p271 = pneg %p83
        %p272 = pneg %p80
        %p273 = pneg %p104
        %p274 = pneg %p101
        %p275 = pneg %p125
        %p276 = pneg %p122
        %p277 = pneg %p146
        %p278 = pneg %p143
        %p279 = pneg %p172
        %p280 = pneg %p169
        %s281 = smul.u32 2, %s20
        %p282 = scmp.lt.s32.totalorder %s281, 3
        %s283 = scalar_select %p282, %s281, 3
        %s284 = smul.addr %s283, 8
        %s285 = scalar_lea.vmem %s6, %s284
        %p286 = pneg %p198
        %p287 = pneg %p195
        %s288 = smul.u32 2, %s20
        %p289 = scmp.lt.s32.totalorder %s288, 3
        %s290 = scalar_select %p289, %s288, 3
        %s291 = smul.addr %s290, 8
        %s292 = scalar_lea.vmem %s7, %s291
        %s293 = smul.u32 2, %s20
        %p294 = scmp.lt.s32.totalorder %s293, 3
        %s295 = scalar_select %p294, %s293, 3
        %s296 = smul.addr %s295, 8
        %s297 = scalar_lea.vmem %s0, %s296
        %s298 = smul.u32 2, %s20
        %s299 = smul.u32 2, %s20
        %p300 = scmp.lt.s32.totalorder %s299, 3
        %s301 = scalar_select %p300, %s299, 3
        %s302 = smul.addr %s301, 8
        %s303 = scalar_lea.vmem %s6, %s302
        %s304 = smul.u32 2, %s20
        %s305 = smul.u32 2, %s20
        %p306 = scmp.lt.s32.totalorder %s305, 3
        %s307 = scalar_select %p306, %s305, 3
        %s308 = smul.addr %s307, 8
        %s309 = scalar_lea.vmem %s7, %s308
        %s310 = smul.u32 2, %s20
        %p311 = scmp.eq.s32.totalorder %s20, 0
        // Predicated region
        $region49: #{tpu_custom_call.1} parent=43 // pred_check
          %p312 = pneg %p311
        $region50: #{tpu_custom_call.1} parent=43 // pred_check_branch
          %314 = sbr.rel (%p312) target = $region52
        $region51: #{tpu_custom_call.1} parent=43 // pred_region
          %v315 = vlaneseq
          %v316 = vand.u32 %v315, 127
          %vm317 = vcmp.eq.s32.totalorder %v316, 0
          %v318 = vsel %vm317, 1, 0
          %v319 = vcvt.s32.f32 %v318
          %vm320 = vcmask 25600
          %321 = vst.msk [vmem:[#allocation5] sm:$0x3] %vm320, %v319
        $region52: #{tpu_custom_call.1} parent=43 // pred_fallthru
          _
        %v322 = vld [vmem:[%s297] sm:$0xff]
        %v323 = vld [vmem:[%s297 + $0x8] sm:$0xff]
        %v324 = vld [vmem:[#allocation6] sm:$0xff]
        %v325 = vld [vmem:[#allocation6 + $0x8] sm:$0xff]
        %v326 = vld [vmem:[#allocation6 + $0x10] sm:$0xff]
        %v327 = vld [vmem:[#allocation6 + $0x18] sm:$0xff]
        %v328 = vld [vmem:[%s3] sm:$0x1]
        %v330 = vlaneseq
        %v331 = vshrl.u32 %v330, 7
        %v332 = vsub.s32 0, %v331
        %v333 = vrot.slane %v328, %v332
        %vm335 = vcmask 261120
        %v337 = vsel %vm335, %v322, 0
        %v340 = vsel %vm335, %v323, 0
        %342 = vmatprep.subr.mxu0 0.0
        %343 = vmatpush1.msra.mxu0 %v324
        %344 = vmatprep.subr.mxu0 0.0
        %345 = vmatpush1.msra.mxu0 %v325
        %346 = vmatprep.subr.mxu0 0.0
        %347 = vmatpush1.msra.mxu0 %v326
        %348 = vmatprep.subr.mxu0 0.0
        %349 = vmatpush1.msra.mxu0 %v327
        %350 = vmatprep.subr.mxu0 0.0
        %351 = vmatpush1.msra.mxu0 0.0
        %352 = vmatprep.subr.mxu0 0.0
        %353 = vmatpush1.msra.mxu0 0.0
        %354 = vmatprep.subr.mxu0 0.0
        %355 = vmatpush1.msra.mxu0 0.0
        %356 = vmatprep.subr.mxu0 0.0
        %357 = vmatpush1.msra.mxu0 0.0
        %358 = vmatprep.subr.mxu0 0.0
        %359 = vmatpush1.msra.mxu0 0.0
        %360 = vmatprep.subr.mxu0 0.0
        %361 = vmatpush1.msra.mxu0 0.0
        %362 = vmatprep.subr.mxu0 0.0
        %363 = vmatpush1.msra.mxu0 0.0
        %364 = vmatprep.subr.mxu0 0.0
        %365 = vmatpush1.msra.mxu0 0.0
        %366 = vmatprep.subr.mxu0 0.0
        %367 = vmatpush1.msra.mxu0 0.0
        %368 = vmatprep.subr.mxu0 0.0
        %369 = vmatpush1.msra.mxu0 0.0
        %370 = vmatprep.subr.mxu0 0.0
        %371 = vmatpush1.msra.mxu0 0.0
        %372 = vmatprep.subr.mxu0 0.0
        %373 = vmatpush1.msra.mxu0 0.0
        %374 = vmatprep.subr.mxu0 0.0
        %375 = vmatpush1.msra.mxu0 0.0
        %376 = vmatprep.subr.mxu0 0.0
        %377 = vmatpush1.msra.mxu0 0.0
        %378 = vmatprep.subr.mxu0 0.0
        %379 = vmatpush1.msra.mxu0 0.0
        %380 = vmatprep.subr.mxu0 0.0
        %381 = vmatpush1.msra.mxu0 0.0
        %382 = vmatprep.subr.mxu0 0.0
        %383 = vmatpush1.msra.mxu0 0.0
        %384 = vmatprep.subr.mxu0 0.0
        %385 = vmatpush1.msra.mxu0 0.0
        %386 = vmatprep.subr.mxu0 0.0
        %387 = vmatpush1.msra.mxu0 0.0
        %388 = vmatprep.subr.mxu0 0.0
        %389 = vmatpush1.msra.mxu0 0.0
        %390 = vmatprep.subr.mxu0 0.0
        %391 = vmatpush1.msra.mxu0 0.0
        %392 = vmatprep.subr.mxu0 0.0
        %393 = vmatpush1.msra.mxu0 0.0
        %394 = vmatprep.subr.mxu0 0.0
        %395 = vmatpush1.msra.mxu0 0.0
        %396 = vmatprep.subr.mxu0 0.0
        %397 = vmatpush1.msra.mxu0 0.0
        %398 = vmatprep.subr.mxu0 0.0
        %399 = vmatpush1.msra.mxu0 0.0
        %400 = vmatprep.subr.mxu0 0.0
        %401 = vmatpush1.msra.mxu0 0.0
        %402 = vmatprep.subr.mxu0 0.0
        %403 = vmatpush1.msra.mxu0 0.0
        %404 = vmatprep.subr.mxu0 0.0
        %405 = vmatpush1.msra.mxu0 0.0
        %406 = vmatprep.mubr.f32.mxu0 0.0
        %407 = vmatmul.mubr.f32.gmra.mrb[0].mxu0 %v337
        %v408 = vpop.f32.mrb[0].mxu0
        %v409 = vadd.f32 %v333, %v408
        %v410 = vpop.f32.mrb[0].mxu0
        %411 = vmatprep.mubr.f32.mxu0 0.0
        %412 = vmatmul.mubr.f32.gmra.mrb[0].mxu0 %v340
        %v413 = vpop.f32.mrb[0].mxu0
        %v414 = vadd.f32 %v333, %v413
        %v415 = vpop.f32.mrb[0].mxu0
        %416 = vdwg.mxu0
        %v417 = vld [vmem:[%s2] sm:$0x1]
        %v418 = vlaneseq
        %v419 = vshrl.u32 %v418, 7
        %v420 = vsub.s32 0, %v419
        %v421 = vrot.slane %v417, %v420
        %v422 = vadd.f32 %v409, %v421
        %v423 = vadd.f32 %v414, %v421
        %v424 = vld [vmem:[%s2 + $0x1] sm:$0x1]
        %v425 = vlaneseq
        %v426 = vshrl.u32 %v425, 7
        %v427 = vsub.s32 0, %v426
        %v428 = vrot.slane %v424, %v427
        %v429 = vadd.f32 %v409, %v428
        %v430 = vadd.f32 %v414, %v428
        %v431 = vld [vmem:[%s2 + $0x2] sm:$0x1]
        %v432 = vlaneseq
        %v433 = vshrl.u32 %v432, 7
        %v434 = vsub.s32 0, %v433
        %v435 = vrot.slane %v431, %v434
        %v436 = vadd.f32 %v409, %v435
        %v437 = vadd.f32 %v414, %v435
        %v438 = vld [vmem:[%s2 + $0x3] sm:$0x1]
        %v439 = vlaneseq
        %v440 = vshrl.u32 %v439, 7
        %v441 = vsub.s32 0, %v440
        %v442 = vrot.slane %v438, %v441
        %v443 = vadd.f32 %v409, %v442
        %v444 = vadd.f32 %v414, %v442
        %v445 = vtanh.pop %v422
        %v446 = vtanh.pop %v423
        %v447 = vtanh.pop %v429
        %v448 = vtanh.pop %v430
        %v449 = vtanh.pop %v436
        %v450 = vtanh.pop %v437
        %v451 = vtanh.pop %v443
        %v452 = vtanh.pop %v444
        %v453 = vld [vmem:[%s4] sm:$0xff]
        %v454 = vld [vmem:[%s4 + $0x8] sm:$0xff]
        %v455 = vld [vmem:[%s4 + $0x10] sm:$0xff]
        %v456 = vld [vmem:[%s4 + $0x18] sm:$0xff]
        %v457 = vld [vmem:[%s5] sm:$0x1]
        %v459 = vlaneseq
        %v460 = vshrl.u32 %v459, 7
        %v461 = vsub.s32 0, %v460
        %v462 = vrot.slane %v457, %v461
        %v465 = vsel %vm335, %v445, 0
        %v468 = vsel %vm335, %v446, 0
        %v471 = vsel %vm335, %v447, 0
        %v474 = vsel %vm335, %v448, 0
        %v477 = vsel %vm335, %v449, 0
        %v480 = vsel %vm335, %v450, 0
        %v483 = vsel %vm335, %v451, 0
        %v486 = vsel %vm335, %v452, 0
        %488 = vmatprep.subr.mxu0 0.0
        %489 = vmatpush1.msra.mxu0 %v453
        %490 = vmatprep.subr.mxu0 0.0
        %491 = vmatpush1.msra.mxu0 %v454
        %492 = vmatprep.subr.mxu0 0.0
        %493 = vmatpush1.msra.mxu0 %v455
        %494 = vmatprep.subr.mxu0 0.0
        %495 = vmatpush1.msra.mxu0 %v456
        %496 = vmatprep.subr.mxu0 0.0
        %497 = vmatpush1.msra.mxu0 0.0
        %498 = vmatprep.subr.mxu0 0.0
        %499 = vmatpush1.msra.mxu0 0.0
        %500 = vmatprep.subr.mxu0 0.0
        %501 = vmatpush1.msra.mxu0 0.0
        %502 = vmatprep.subr.mxu0 0.0
        %503 = vmatpush1.msra.mxu0 0.0
        %504 = vmatprep.subr.mxu0 0.0
        %505 = vmatpush1.msra.mxu0 0.0
        %506 = vmatprep.subr.mxu0 0.0
        %507 = vmatpush1.msra.mxu0 0.0
        %508 = vmatprep.subr.mxu0 0.0
        %509 = vmatpush1.msra.mxu0 0.0
        %510 = vmatprep.subr.mxu0 0.0
        %511 = vmatpush1.msra.mxu0 0.0
        %512 = vmatprep.subr.mxu0 0.0
        %513 = vmatpush1.msra.mxu0 0.0
        %514 = vmatprep.subr.mxu0 0.0
        %515 = vmatpush1.msra.mxu0 0.0
        %516 = vmatprep.subr.mxu0 0.0
        %517 = vmatpush1.msra.mxu0 0.0
        %518 = vmatprep.subr.mxu0 0.0
        %519 = vmatpush1.msra.mxu0 0.0
        %520 = vmatprep.subr.mxu0 0.0
        %521 = vmatpush1.msra.mxu0 0.0
        %522 = vmatprep.subr.mxu0 0.0
        %523 = vmatpush1.msra.mxu0 0.0
        %524 = vmatprep.subr.mxu0 0.0
        %525 = vmatpush1.msra.mxu0 0.0
        %526 = vmatprep.subr.mxu0 0.0
        %527 = vmatpush1.msra.mxu0 0.0
        %528 = vmatprep.subr.mxu0 0.0
        %529 = vmatpush1.msra.mxu0 0.0
        %530 = vmatprep.subr.mxu0 0.0
        %531 = vmatpush1.msra.mxu0 0.0
        %532 = vmatprep.subr.mxu0 0.0
        %533 = vmatpush1.msra.mxu0 0.0
        %534 = vmatprep.subr.mxu0 0.0
        %535 = vmatpush1.msra.mxu0 0.0
        %536 = vmatprep.subr.mxu0 0.0
        %537 = vmatpush1.msra.mxu0 0.0
        %538 = vmatprep.subr.mxu0 0.0
        %539 = vmatpush1.msra.mxu0 0.0
        %540 = vmatprep.subr.mxu0 0.0
        %541 = vmatpush1.msra.mxu0 0.0
        %542 = vmatprep.subr.mxu0 0.0
        %543 = vmatpush1.msra.mxu0 0.0
        %544 = vmatprep.subr.mxu0 0.0
        %545 = vmatpush1.msra.mxu0 0.0
        %546 = vmatprep.subr.mxu0 0.0
        %547 = vmatpush1.msra.mxu0 0.0
        %548 = vmatprep.subr.mxu0 0.0
        %549 = vmatpush1.msra.mxu0 0.0
        %550 = vmatprep.subr.mxu0 0.0
        %551 = vmatpush1.msra.mxu0 0.0
        %552 = vmatprep.mubr.f32.mxu0 0.0
        %553 = vmatmul.mubr.f32.gmra.mrb[0].mxu0 %v465
        %v554 = vpop.f32.mrb[0].mxu0
        %v555 = vadd.f32 %v462, %v554
        %v556 = vpop.f32.mrb[0].mxu0
        %557 = vmatprep.mubr.f32.mxu0 0.0
        %558 = vmatmul.mubr.f32.gmra.mrb[0].mxu0 %v468
        %v559 = vpop.f32.mrb[0].mxu0
        %v560 = vadd.f32 %v462, %v559
        %v561 = vpop.f32.mrb[0].mxu0
        %562 = vmatprep.mubr.f32.mxu0 0.0
        %563 = vmatmul.mubr.f32.gmra.mrb[0].mxu0 %v471
        %v564 = vpop.f32.mrb[0].mxu0
        %v565 = vadd.f32 %v462, %v564
        %v566 = vpop.f32.mrb[0].mxu0
        %567 = vmatprep.mubr.f32.mxu0 0.0
        %568 = vmatmul.mubr.f32.gmra.mrb[0].mxu0 %v474
        %v569 = vpop.f32.mrb[0].mxu0
        %v570 = vadd.f32 %v462, %v569
        %v571 = vpop.f32.mrb[0].mxu0
        %572 = vmatprep.mubr.f32.mxu0 0.0
        %573 = vmatmul.mubr.f32.gmra.mrb[0].mxu0 %v477
        %v574 = vpop.f32.mrb[0].mxu0
        %v575 = vadd.f32 %v462, %v574
        %v576 = vpop.f32.mrb[0].mxu0
        %577 = vmatprep.mubr.f32.mxu0 0.0
        %578 = vmatmul.mubr.f32.gmra.mrb[0].mxu0 %v480
        %v579 = vpop.f32.mrb[0].mxu0
        %v580 = vadd.f32 %v462, %v579
        %v581 = vpop.f32.mrb[0].mxu0
        %582 = vmatprep.mubr.f32.mxu0 0.0
        %583 = vmatmul.mubr.f32.gmra.mrb[0].mxu0 %v483
        %v584 = vpop.f32.mrb[0].mxu0
        %v585 = vadd.f32 %v462, %v584
        %v586 = vpop.f32.mrb[0].mxu0
        %587 = vmatprep.mubr.f32.mxu0 0.0
        %588 = vmatmul.mubr.f32.gmra.mrb[0].mxu0 %v486
        %v589 = vpop.f32.mrb[0].mxu0
        %v590 = vadd.f32 %v462, %v589
        %v591 = vpop.f32.mrb[0].mxu0
        %592 = vdwg.mxu0
        %v593 = vlaneseq
        %v594 = vand.u32 %v593, 127
        %vm595 = vcmask 31744
        %v596 = vsel %vm595, %v555, -inf
        %597 = vmax.xlane.f32.xlu0 %v596
        %v598 = vpop.xlane.xlu0 %597
        %v599 = vsel %vm595, %v560, -inf
        %600 = vmax.xlane.f32.xlu0 %v599
        %v601 = vpop.xlane.xlu0 %600
        %vm602 = vcmp.eq.f32.partialorder %v555, %v598
        %vm603 = vcmp.eq.f32.partialorder %v560, %v601
        %v604 = vsel %vm602, %v594, 4
        %v605 = vsel %vm603, %v594, 4
        %v606 = vsel %vm595, %v604, 2147483647
        %v607 = vand.u32 %v606, 65535
        %v608 = vshra.s32 %v606, 16
        %v609 = vcvt.s32.f32 %v607
        %v610 = vcvt.s32.f32 %v608
        %611 = vmin.xlane.f32.xlu0 %v610
        %v612 = vpop.xlane.xlu0 %611
        %vm613 = vcmp.eq.f32.partialorder %v610, %v612
        %v614 = vsel %vm613, %v609, inf
        %615 = vmin.xlane.f32.xlu0 %v614
        %v616 = vpop.xlane.xlu0 %615
        %v617 = vcvt.f32.s32 %v616
        %v618 = vcvt.f32.s32 %v612
        %v619 = vshll.u32 %v618, 16
        %v620 = vadd.s32 %v619, %v617
        %v621 = vsel %vm595, %v605, 2147483647
        %v622 = vand.u32 %v621, 65535
        %v623 = vshra.s32 %v621, 16
        %v624 = vcvt.s32.f32 %v622
        %v625 = vcvt.s32.f32 %v623
        %626 = vmin.xlane.f32.xlu0 %v625
        %v627 = vpop.xlane.xlu0 %626
        %vm628 = vcmp.eq.f32.partialorder %v625, %v627
        %v629 = vsel %vm628, %v624, inf
        %630 = vmin.xlane.f32.xlu0 %v629
        %v631 = vpop.xlane.xlu0 %630
        %v632 = vcvt.f32.s32 %v631
        %v633 = vcvt.f32.s32 %v627
        %v634 = vshll.u32 %v633, 16
        %v635 = vadd.s32 %v634, %v632
        %vm636 = vcmp.eq.s32.totalorder %v620, %v594
        %vm637 = vcmp.eq.s32.totalorder %v635, %v594
        %v638 = vsel %vm636, 1, 0
        %v639 = vsel %vm637, 1, 0
        %v640 = vcvt.s32.f32 %v638
        %v641 = vcvt.s32.f32 %v639
        %v642 = vsel %vm595, %v565, -inf
        %643 = vmax.xlane.f32.xlu0 %v642
        %v644 = vpop.xlane.xlu0 %643
        %v645 = vsel %vm595, %v570, -inf
        %646 = vmax.xlane.f32.xlu0 %v645
        %v647 = vpop.xlane.xlu0 %646
        %vm648 = vcmp.eq.f32.partialorder %v565, %v644
        %vm649 = vcmp.eq.f32.partialorder %v570, %v647
        %v650 = vsel %vm648, %v594, 4
        %v651 = vsel %vm649, %v594, 4
        %v652 = vsel %vm595, %v650, 2147483647
        %v653 = vand.u32 %v652, 65535
        %v654 = vshra.s32 %v652, 16
        %v655 = vcvt.s32.f32 %v653
        %v656 = vcvt.s32.f32 %v654
        %657 = vmin.xlane.f32.xlu0 %v656
        %v658 = vpop.xlane.xlu0 %657
        %vm659 = vcmp.eq.f32.partialorder %v656, %v658
        %v660 = vsel %vm659, %v655, inf
        %661 = vmin.xlane.f32.xlu0 %v660
        %v662 = vpop.xlane.xlu0 %661
        %v663 = vcvt.f32.s32 %v662
        %v664 = vcvt.f32.s32 %v658
        %v665 = vshll.u32 %v664, 16
        %v666 = vadd.s32 %v665, %v663
        %v667 = vsel %vm595, %v651, 2147483647
        %v668 = vand.u32 %v667, 65535
        %v669 = vshra.s32 %v667, 16
        %v670 = vcvt.s32.f32 %v668
        %v671 = vcvt.s32.f32 %v669
        %672 = vmin.xlane.f32.xlu0 %v671
        %v673 = vpop.xlane.xlu0 %672
        %vm674 = vcmp.eq.f32.partialorder %v671, %v673
        %v675 = vsel %vm674, %v670, inf
        %676 = vmin.xlane.f32.xlu0 %v675
        %v677 = vpop.xlane.xlu0 %676
        %v678 = vcvt.f32.s32 %v677
        %v679 = vcvt.f32.s32 %v673
        %v680 = vshll.u32 %v679, 16
        %v681 = vadd.s32 %v680, %v678
        %vm682 = vcmp.eq.s32.totalorder %v666, %v594
        %vm683 = vcmp.eq.s32.totalorder %v681, %v594
        %v684 = vsel %vm682, 1, 0
        %v685 = vsel %vm683, 1, 0
        %v686 = vcvt.s32.f32 %v684
        %v687 = vcvt.s32.f32 %v685
        %v688 = vsel %vm595, %v575, -inf
        %689 = vmax.xlane.f32.xlu0 %v688
        %v690 = vpop.xlane.xlu0 %689
        %v691 = vsel %vm595, %v580, -inf
        %692 = vmax.xlane.f32.xlu0 %v691
        %v693 = vpop.xlane.xlu0 %692
        %vm694 = vcmp.eq.f32.partialorder %v575, %v690
        %vm695 = vcmp.eq.f32.partialorder %v580, %v693
        %v696 = vsel %vm694, %v594, 4
        %v697 = vsel %vm695, %v594, 4
        %v698 = vsel %vm595, %v696, 2147483647
        %v699 = vand.u32 %v698, 65535
        %v700 = vshra.s32 %v698, 16
        %v701 = vcvt.s32.f32 %v699
        %v702 = vcvt.s32.f32 %v700
        %703 = vmin.xlane.f32.xlu0 %v702
        %v704 = vpop.xlane.xlu0 %703
        %vm705 = vcmp.eq.f32.partialorder %v702, %v704
        %v706 = vsel %vm705, %v701, inf
        %707 = vmin.xlane.f32.xlu0 %v706
        %v708 = vpop.xlane.xlu0 %707
        %v709 = vcvt.f32.s32 %v708
        %v710 = vcvt.f32.s32 %v704
        %v711 = vshll.u32 %v710, 16
        %v712 = vadd.s32 %v711, %v709
        %v713 = vsel %vm595, %v697, 2147483647
        %v714 = vand.u32 %v713, 65535
        %v715 = vshra.s32 %v713, 16
        %v716 = vcvt.s32.f32 %v714
        %v717 = vcvt.s32.f32 %v715
        %718 = vmin.xlane.f32.xlu0 %v717
        %v719 = vpop.xlane.xlu0 %718
        %vm720 = vcmp.eq.f32.partialorder %v717, %v719
        %v721 = vsel %vm720, %v716, inf
        %722 = vmin.xlane.f32.xlu0 %v721
        %v723 = vpop.xlane.xlu0 %722
        %v724 = vcvt.f32.s32 %v723
        %v725 = vcvt.f32.s32 %v719
        %v726 = vshll.u32 %v725, 16
        %v727 = vadd.s32 %v726, %v724
        %vm728 = vcmp.eq.s32.totalorder %v712, %v594
        %vm729 = vcmp.eq.s32.totalorder %v727, %v594
        %v730 = vsel %vm728, 1, 0
        %v731 = vsel %vm729, 1, 0
        %v732 = vcvt.s32.f32 %v730
        %v733 = vcvt.s32.f32 %v731
        %v734 = vsel %vm595, %v585, -inf
        %735 = vmax.xlane.f32.xlu0 %v734
        %v736 = vpop.xlane.xlu0 %735
        %v737 = vsel %vm595, %v590, -inf
        %738 = vmax.xlane.f32.xlu0 %v737
        %v739 = vpop.xlane.xlu0 %738
        %vm740 = vcmp.eq.f32.partialorder %v585, %v736
        %vm741 = vcmp.eq.f32.partialorder %v590, %v739
        %v742 = vsel %vm740, %v594, 4
        %v743 = vsel %vm741, %v594, 4
        %v744 = vsel %vm595, %v742, 2147483647
        %v745 = vand.u32 %v744, 65535
        %v746 = vshra.s32 %v744, 16
        %v747 = vcvt.s32.f32 %v745
        %v748 = vcvt.s32.f32 %v746
        %749 = vmin.xlane.f32.xlu0 %v748
        %v750 = vpop.xlane.xlu0 %749
        %vm751 = vcmp.eq.f32.partialorder %v748, %v750
        %v752 = vsel %vm751, %v747, inf
        %753 = vmin.xlane.f32.xlu0 %v752
        %v754 = vpop.xlane.xlu0 %753
        %v755 = vcvt.f32.s32 %v754
        %v756 = vcvt.f32.s32 %v750
        %v757 = vshll.u32 %v756, 16
        %v758 = vadd.s32 %v757, %v755
        %v759 = vsel %vm595, %v743, 2147483647
        %v760 = vand.u32 %v759, 65535
        %v761 = vshra.s32 %v759, 16
        %v762 = vcvt.s32.f32 %v760
        %v763 = vcvt.s32.f32 %v761
        %764 = vmin.xlane.f32.xlu0 %v763
        %v765 = vpop.xlane.xlu0 %764
        %vm766 = vcmp.eq.f32.partialorder %v763, %v765
        %v767 = vsel %vm766, %v762, inf
        %768 = vmin.xlane.f32.xlu0 %v767
        %v769 = vpop.xlane.xlu0 %768
        %v770 = vcvt.f32.s32 %v769
        %v771 = vcvt.f32.s32 %v765
        %v772 = vshll.u32 %v771, 16
        %v773 = vadd.s32 %v772, %v770
        %vm774 = vcmp.eq.s32.totalorder %v758, %v594
        %vm775 = vcmp.eq.s32.totalorder %v773, %v594
        %v776 = vsel %vm774, 1, 0
        %v777 = vsel %vm775, 1, 0
        %v778 = vcvt.s32.f32 %v776
        %v779 = vcvt.s32.f32 %v777
        %782 = vrot.lane.b32.xlu0 %v686, 4
        %v783 = vpop.permute.xlu0 %782
        %784 = vrot.lane.b32.xlu0 %v687, 4
        %v785 = vpop.permute.xlu0 %784
        %790 = vrot.lane.b32.xlu0 %v732, 8
        %v791 = vpop.permute.xlu0 %790
        %792 = vrot.lane.b32.xlu0 %v733, 8
        %v793 = vpop.permute.xlu0 %792
        %798 = vrot.lane.b32.xlu0 %v778, 12
        %v799 = vpop.permute.xlu0 %798
        %800 = vrot.lane.b32.xlu0 %v779, 12
        %v801 = vpop.permute.xlu0 %800
        %v804 = vsel %vm595, %v640, %v783
        %v805 = vsel %vm595, %v641, %v785
        %vm806 = vcmask 64512
        %v807 = vsel %vm806, %v804, %v791
        %v808 = vsel %vm806, %v805, %v793
        %vm809 = vcmask 97280
        %v810 = vsel %vm809, %v807, %v799
        %v811 = vsel %vm809, %v808, %v801
        %vm812 = vcmask 130048
        %813 = vst.msk [vmem:[#allocation2] sm:$0xff] %vm812, %v810
        %814 = vst.msk [vmem:[#allocation2 + $0x8] sm:$0xff] %vm812, %v811
        %817 = vrot.lane.b32.xlu0 %v565, 4
        %v818 = vpop.permute.xlu0 %817
        %819 = vrot.lane.b32.xlu0 %v570, 4
        %v820 = vpop.permute.xlu0 %819
        %825 = vrot.lane.b32.xlu0 %v575, 8
        %v826 = vpop.permute.xlu0 %825
        %827 = vrot.lane.b32.xlu0 %v580, 8
        %v828 = vpop.permute.xlu0 %827
        %833 = vrot.lane.b32.xlu0 %v585, 12
        %v834 = vpop.permute.xlu0 %833
        %835 = vrot.lane.b32.xlu0 %v590, 12
        %v836 = vpop.permute.xlu0 %835
        %v839 = vsel %vm595, %v555, %v818
        %v840 = vsel %vm595, %v560, %v820
        %v841 = vsel %vm806, %v839, %v826
        %v842 = vsel %vm806, %v840, %v828
        %v843 = vsel %vm809, %v841, %v834
        %v844 = vsel %vm809, %v842, %v836
        %845 = vst.msk [vmem:[#allocation3] sm:$0xff] %vm812, %v843
        %846 = vst.msk [vmem:[#allocation3 + $0x8] sm:$0xff] %vm812, %v844
        %v847 = vld [vmem:[#allocation5] sm:$0x3]
        %vm848 = vcmask 25600
        %849 = vst.msk [vmem:[#allocation4] sm:$0x3] %vm848, %v847
        %v850 = vld [vmem:[#allocation2] sm:$0x3]
        %852 = vset.pattern.permute.xlu0 0
        %853 = vperm.xlu0 %852, %v847
        %v854 = vpop.permute.xlu0 %853
        %v856 = vmul.f32 %v854, %v850
        %857 = vset.pattern.permute.xlu0 1
        %858 = vperm.xlu0 %857, %v847
        %v859 = vpop.permute.xlu0 %858
        %v861 = vmul.f32 %v859, %v850
        %863 = vrot.lane.b32.xlu0 %v861, 124
        %v864 = vpop.permute.xlu0 %863
        %v866 = vadd.f32 %v856, %v864
        %867 = vset.pattern.permute.xlu0 2
        %868 = vperm.xlu0 %867, %v847
        %v869 = vpop.permute.xlu0 %868
        %v871 = vmul.f32 %v869, %v850
        %873 = vrot.lane.b32.xlu0 %v871, 120
        %v874 = vpop.permute.xlu0 %873
        %v876 = vadd.f32 %v866, %v874
        %877 = vset.pattern.permute.xlu0 3
        %878 = vperm.xlu0 %877, %v847
        %v879 = vpop.permute.xlu0 %878
        %v881 = vmul.f32 %v879, %v850
        %883 = vrot.lane.b32.xlu0 %v881, 116
        %v884 = vpop.permute.xlu0 %883
        %v886 = vadd.f32 %v876, %v884
        %s887 = scalar_lea.vmem [#allocation4], 2
        %888 = vst.msk [vmem:[%s887] sm:$0x3] %vm848, %v886
        %s889 = scalar_lea.vmem [#allocation2], 2
        %v890 = vld [vmem:[%s889] sm:$0x3]
        %892 = vset.pattern.permute.xlu0 0
        %893 = vperm.xlu0 %892, %v886
        %v894 = vpop.permute.xlu0 %893
        %v896 = vmul.f32 %v894, %v890
        %897 = vset.pattern.permute.xlu0 1
        %898 = vperm.xlu0 %897, %v886
        %v899 = vpop.permute.xlu0 %898
        %v901 = vmul.f32 %v899, %v890
        %903 = vrot.lane.b32.xlu0 %v901, 124
        %v904 = vpop.permute.xlu0 %903
        %v906 = vadd.f32 %v896, %v904
        %907 = vset.pattern.permute.xlu0 2
        %908 = vperm.xlu0 %907, %v886
        %v909 = vpop.permute.xlu0 %908
        %v911 = vmul.f32 %v909, %v890
        %913 = vrot.lane.b32.xlu0 %v911, 120
        %v914 = vpop.permute.xlu0 %913
        %v916 = vadd.f32 %v906, %v914
        %917 = vset.pattern.permute.xlu0 3
        %918 = vperm.xlu0 %917, %v886
        %v919 = vpop.permute.xlu0 %918
        %v921 = vmul.f32 %v919, %v890
        %923 = vrot.lane.b32.xlu0 %v921, 116
        %v924 = vpop.permute.xlu0 %923
        %v926 = vadd.f32 %v916, %v924
        %s927 = scalar_lea.vmem [#allocation4], 4
        %928 = vst.msk [vmem:[%s927] sm:$0x3] %vm848, %v926
        %s929 = scalar_lea.vmem [#allocation2], 4
        %v930 = vld [vmem:[%s929] sm:$0x3]
        %932 = vset.pattern.permute.xlu0 0
        %933 = vperm.xlu0 %932, %v926
        %v934 = vpop.permute.xlu0 %933
        %v936 = vmul.f32 %v934, %v930
        %937 = vset.pattern.permute.xlu0 1
        %938 = vperm.xlu0 %937, %v926
        %v939 = vpop.permute.xlu0 %938
        %v941 = vmul.f32 %v939, %v930
        %943 = vrot.lane.b32.xlu0 %v941, 124
        %v944 = vpop.permute.xlu0 %943
        %v946 = vadd.f32 %v936, %v944
        %947 = vset.pattern.permute.xlu0 2
        %948 = vperm.xlu0 %947, %v926
        %v949 = vpop.permute.xlu0 %948
        %v951 = vmul.f32 %v949, %v930
        %953 = vrot.lane.b32.xlu0 %v951, 120
        %v954 = vpop.permute.xlu0 %953
        %v956 = vadd.f32 %v946, %v954
        %957 = vset.pattern.permute.xlu0 3
        %958 = vperm.xlu0 %957, %v926
        %v959 = vpop.permute.xlu0 %958
        %v961 = vmul.f32 %v959, %v930
        %963 = vrot.lane.b32.xlu0 %v961, 116
        %v964 = vpop.permute.xlu0 %963
        %v966 = vadd.f32 %v956, %v964
        %s967 = scalar_lea.vmem [#allocation4], 6
        %968 = vst.msk [vmem:[%s967] sm:$0x3] %vm848, %v966
        %s969 = scalar_lea.vmem [#allocation2], 6
        %v970 = vld [vmem:[%s969] sm:$0x3]
        %972 = vset.pattern.permute.xlu0 0
        %973 = vperm.xlu0 %972, %v966
        %v974 = vpop.permute.xlu0 %973
        %v976 = vmul.f32 %v974, %v970
        %977 = vset.pattern.permute.xlu0 1
        %978 = vperm.xlu0 %977, %v966
        %v979 = vpop.permute.xlu0 %978
        %v981 = vmul.f32 %v979, %v970
        %983 = vrot.lane.b32.xlu0 %v981, 124
        %v984 = vpop.permute.xlu0 %983
        %v986 = vadd.f32 %v976, %v984
        %987 = vset.pattern.permute.xlu0 2
        %988 = vperm.xlu0 %987, %v966
        %v989 = vpop.permute.xlu0 %988
        %v991 = vmul.f32 %v989, %v970
        %993 = vrot.lane.b32.xlu0 %v991, 120
        %v994 = vpop.permute.xlu0 %993
        %v996 = vadd.f32 %v986, %v994
        %997 = vset.pattern.permute.xlu0 3
        %998 = vperm.xlu0 %997, %v966
        %v999 = vpop.permute.xlu0 %998
        %v1001 = vmul.f32 %v999, %v970
        %1003 = vrot.lane.b32.xlu0 %v1001, 116
        %v1004 = vpop.permute.xlu0 %1003
        %v1006 = vadd.f32 %v996, %v1004
        %s1007 = scalar_lea.vmem [#allocation4], 8
        %1008 = vst.msk [vmem:[%s1007] sm:$0x3] %vm848, %v1006
        %s1009 = scalar_lea.vmem [#allocation2], 8
        %v1010 = vld [vmem:[%s1009] sm:$0x3]
        %1012 = vset.pattern.permute.xlu0 0
        %1013 = vperm.xlu0 %1012, %v1006
        %v1014 = vpop.permute.xlu0 %1013
        %v1016 = vmul.f32 %v1014, %v1010
        %1017 = vset.pattern.permute.xlu0 1
        %1018 = vperm.xlu0 %1017, %v1006
        %v1019 = vpop.permute.xlu0 %1018
        %v1021 = vmul.f32 %v1019, %v1010
        %1023 = vrot.lane.b32.xlu0 %v1021, 124
        %v1024 = vpop.permute.xlu0 %1023
        %v1026 = vadd.f32 %v1016, %v1024
        %1027 = vset.pattern.permute.xlu0 2
        %1028 = vperm.xlu0 %1027, %v1006
        %v1029 = vpop.permute.xlu0 %1028
        %v1031 = vmul.f32 %v1029, %v1010
        %1033 = vrot.lane.b32.xlu0 %v1031, 120
        %v1034 = vpop.permute.xlu0 %1033
        %v1036 = vadd.f32 %v1026, %v1034
        %1037 = vset.pattern.permute.xlu0 3
        %1038 = vperm.xlu0 %1037, %v1006
        %v1039 = vpop.permute.xlu0 %1038
        %v1041 = vmul.f32 %v1039, %v1010
        %1043 = vrot.lane.b32.xlu0 %v1041, 116
        %v1044 = vpop.permute.xlu0 %1043
        %v1046 = vadd.f32 %v1036, %v1044
        %s1047 = scalar_lea.vmem [#allocation4], 10
        %1048 = vst.msk [vmem:[%s1047] sm:$0x3] %vm848, %v1046
        %s1049 = scalar_lea.vmem [#allocation2], 10
        %v1050 = vld [vmem:[%s1049] sm:$0x3]
        %1052 = vset.pattern.permute.xlu0 0
        %1053 = vperm.xlu0 %1052, %v1046
        %v1054 = vpop.permute.xlu0 %1053
        %v1056 = vmul.f32 %v1054, %v1050
        %1057 = vset.pattern.permute.xlu0 1
        %1058 = vperm.xlu0 %1057, %v1046
        %v1059 = vpop.permute.xlu0 %1058
        %v1061 = vmul.f32 %v1059, %v1050
        %1063 = vrot.lane.b32.xlu0 %v1061, 124
        %v1064 = vpop.permute.xlu0 %1063
        %v1066 = vadd.f32 %v1056, %v1064
        %1067 = vset.pattern.permute.xlu0 2
        %1068 = vperm.xlu0 %1067, %v1046
        %v1069 = vpop.permute.xlu0 %1068
        %v1071 = vmul.f32 %v1069, %v1050
        %1073 = vrot.lane.b32.xlu0 %v1071, 120
        %v1074 = vpop.permute.xlu0 %1073
        %v1076 = vadd.f32 %v1066, %v1074
        %1077 = vset.pattern.permute.xlu0 3
        %1078 = vperm.xlu0 %1077, %v1046
        %v1079 = vpop.permute.xlu0 %1078
        %v1081 = vmul.f32 %v1079, %v1050
        %1083 = vrot.lane.b32.xlu0 %v1081, 116
        %v1084 = vpop.permute.xlu0 %1083
        %v1086 = vadd.f32 %v1076, %v1084
        %s1087 = scalar_lea.vmem [#allocation4], 12
        %1088 = vst.msk [vmem:[%s1087] sm:$0x3] %vm848, %v1086
        %s1089 = scalar_lea.vmem [#allocation2], 12
        %v1090 = vld [vmem:[%s1089] sm:$0x3]
        %1092 = vset.pattern.permute.xlu0 0
        %1093 = vperm.xlu0 %1092, %v1086
        %v1094 = vpop.permute.xlu0 %1093
        %v1096 = vmul.f32 %v1094, %v1090
        %1097 = vset.pattern.permute.xlu0 1
        %1098 = vperm.xlu0 %1097, %v1086
        %v1099 = vpop.permute.xlu0 %1098
        %v1101 = vmul.f32 %v1099, %v1090
        %1103 = vrot.lane.b32.xlu0 %v1101, 124
        %v1104 = vpop.permute.xlu0 %1103
        %v1106 = vadd.f32 %v1096, %v1104
        %1107 = vset.pattern.permute.xlu0 2
        %1108 = vperm.xlu0 %1107, %v1086
        %v1109 = vpop.permute.xlu0 %1108
        %v1111 = vmul.f32 %v1109, %v1090
        %1113 = vrot.lane.b32.xlu0 %v1111, 120
        %v1114 = vpop.permute.xlu0 %1113
        %v1116 = vadd.f32 %v1106, %v1114
        %1117 = vset.pattern.permute.xlu0 3
        %1118 = vperm.xlu0 %1117, %v1086
        %v1119 = vpop.permute.xlu0 %1118
        %v1121 = vmul.f32 %v1119, %v1090
        %1123 = vrot.lane.b32.xlu0 %v1121, 116
        %v1124 = vpop.permute.xlu0 %1123
        %v1126 = vadd.f32 %v1116, %v1124
        %s1127 = scalar_lea.vmem [#allocation4], 14
        %1128 = vst.msk [vmem:[%s1127] sm:$0x3] %vm848, %v1126
        %s1129 = scalar_lea.vmem [#allocation2], 14
        %v1130 = vld [vmem:[%s1129] sm:$0x3]
        %1132 = vset.pattern.permute.xlu0 0
        %1133 = vperm.xlu0 %1132, %v1126
        %v1134 = vpop.permute.xlu0 %1133
        %v1136 = vmul.f32 %v1134, %v1130
        %1137 = vset.pattern.permute.xlu0 1
        %1138 = vperm.xlu0 %1137, %v1126
        %v1139 = vpop.permute.xlu0 %1138
        %v1141 = vmul.f32 %v1139, %v1130
        %1143 = vrot.lane.b32.xlu0 %v1141, 124
        %v1144 = vpop.permute.xlu0 %1143
        %v1146 = vadd.f32 %v1136, %v1144
        %1147 = vset.pattern.permute.xlu0 2
        %1148 = vperm.xlu0 %1147, %v1126
        %v1149 = vpop.permute.xlu0 %1148
        %v1151 = vmul.f32 %v1149, %v1130
        %1153 = vrot.lane.b32.xlu0 %v1151, 120
        %v1154 = vpop.permute.xlu0 %1153
        %v1156 = vadd.f32 %v1146, %v1154
        %1157 = vset.pattern.permute.xlu0 3
        %1158 = vperm.xlu0 %1157, %v1126
        %v1159 = vpop.permute.xlu0 %1158
        %v1161 = vmul.f32 %v1159, %v1130
        %1163 = vrot.lane.b32.xlu0 %v1161, 116
        %v1164 = vpop.permute.xlu0 %1163
        %v1166 = vadd.f32 %v1156, %v1164
        %1167 = vst.msk [vmem:[#allocation5] sm:$0x3] %vm848, %v1166
        %v1168 = vld [vmem:[#allocation4] sm:$0xff]
        %v1169 = vld [vmem:[#allocation4 + $0x8] sm:$0xff]
        %v1170 = vld [vmem:[#allocation3] sm:$0xff]
        %v1171 = vld [vmem:[#allocation3 + $0x8] sm:$0xff]
        %1173 = vset.pattern.permute.xlu0 0
        %1174 = vperm.xlu0 %1173, %v1168
        %v1175 = vpop.permute.xlu0 %1174
        %1178 = vset.pattern.permute.xlu0 0
        %1179 = vperm.xlu0 %1178, %v1169
        %v1180 = vpop.permute.xlu0 %1179
        %v1182 = vmul.f32 %v1175, %v1170
        %v1183 = vmul.f32 %v1180, %v1171
        %1184 = vset.pattern.permute.xlu0 1
        %1185 = vperm.xlu0 %1184, %v1168
        %v1186 = vpop.permute.xlu0 %1185
        %1188 = vset.pattern.permute.xlu0 1
        %1189 = vperm.xlu0 %1188, %v1169
        %v1190 = vpop.permute.xlu0 %1189
        %v1192 = vmul.f32 %v1186, %v1170
        %v1193 = vmul.f32 %v1190, %v1171
        %1196 = vrot.lane.b32.xlu0 %v1192, 124
        %v1197 = vpop.permute.xlu0 %1196
        %1198 = vrot.lane.b32.xlu0 %v1193, 124
        %v1199 = vpop.permute.xlu0 %1198
        %v1202 = vadd.f32 %v1182, %v1197
        %v1203 = vadd.f32 %v1183, %v1199
        %1204 = vset.pattern.permute.xlu0 2
        %1205 = vperm.xlu0 %1204, %v1168
        %v1206 = vpop.permute.xlu0 %1205
        %1208 = vset.pattern.permute.xlu0 2
        %1209 = vperm.xlu0 %1208, %v1169
        %v1210 = vpop.permute.xlu0 %1209
        %v1212 = vmul.f32 %v1206, %v1170
        %v1213 = vmul.f32 %v1210, %v1171
        %1216 = vrot.lane.b32.xlu0 %v1212, 120
        %v1217 = vpop.permute.xlu0 %1216
        %1218 = vrot.lane.b32.xlu0 %v1213, 120
        %v1219 = vpop.permute.xlu0 %1218
        %v1222 = vadd.f32 %v1202, %v1217
        %v1223 = vadd.f32 %v1203, %v1219
        %1224 = vset.pattern.permute.xlu0 3
        %1225 = vperm.xlu0 %1224, %v1168
        %v1226 = vpop.permute.xlu0 %1225
        %1228 = vset.pattern.permute.xlu0 3
        %1229 = vperm.xlu0 %1228, %v1169
        %v1230 = vpop.permute.xlu0 %1229
        %v1232 = vmul.f32 %v1226, %v1170
        %v1233 = vmul.f32 %v1230, %v1171
        %1236 = vrot.lane.b32.xlu0 %v1232, 116
        %v1237 = vpop.permute.xlu0 %1236
        %1238 = vrot.lane.b32.xlu0 %v1233, 116
        %v1239 = vpop.permute.xlu0 %1238
        %v1242 = vadd.f32 %v1222, %v1237
        %v1243 = vadd.f32 %v1223, %v1239
        %1244 = vst.msk [vmem:[%s303] sm:$0xff] %vm595, %v1242
        %1245 = vst.msk [vmem:[%s303 + $0x8] sm:$0xff] %vm595, %v1243
        %v1246 = vsel %vm595, %v1242, -inf
        %1247 = vmax.xlane.f32.xlu0 %v1246
        %v1248 = vpop.xlane.xlu0 %1247
        %v1249 = vsel %vm595, %v1243, -inf
        %1250 = vmax.xlane.f32.xlu0 %v1249
        %v1251 = vpop.xlane.xlu0 %1250
        %vm1252 = vcmp.eq.f32.partialorder %v1242, %v1248
        %vm1253 = vcmp.eq.f32.partialorder %v1243, %v1251
        %v1254 = vsel %vm1252, %v594, 4
        %v1255 = vsel %vm1253, %v594, 4
        %v1256 = vsel %vm595, %v1254, 2147483647
        %v1257 = vand.u32 %v1256, 65535
        %v1258 = vshra.s32 %v1256, 16
        %v1259 = vcvt.s32.f32 %v1257
        %v1260 = vcvt.s32.f32 %v1258
        %1261 = vmin.xlane.f32.xlu0 %v1260
        %v1262 = vpop.xlane.xlu0 %1261
        %vm1263 = vcmp.eq.f32.partialorder %v1260, %v1262
        %v1264 = vsel %vm1263, %v1259, inf
        %1265 = vmin.xlane.f32.xlu0 %v1264
        %v1266 = vpop.xlane.xlu0 %1265
        %v1267 = vcvt.f32.s32 %v1266
        %v1268 = vcvt.f32.s32 %v1262
        %v1269 = vshll.u32 %v1268, 16
        %v1270 = vadd.s32 %v1269, %v1267
        %v1271 = vsel %vm595, %v1255, 2147483647
        %v1272 = vand.u32 %v1271, 65535
        %v1273 = vshra.s32 %v1271, 16
        %v1274 = vcvt.s32.f32 %v1272
        %v1275 = vcvt.s32.f32 %v1273
        %1276 = vmin.xlane.f32.xlu0 %v1275
        %v1277 = vpop.xlane.xlu0 %1276
        %vm1278 = vcmp.eq.f32.partialorder %v1275, %v1277
        %v1279 = vsel %vm1278, %v1274, inf
        %1280 = vmin.xlane.f32.xlu0 %v1279
        %v1281 = vpop.xlane.xlu0 %1280
        %v1282 = vcvt.f32.s32 %v1281
        %v1283 = vcvt.f32.s32 %v1277
        %v1284 = vshll.u32 %v1283, 16
        %v1285 = vadd.s32 %v1284, %v1282
        %vm1286 = vcmask 7168
        %1287 = vst.msk [vmem:[%s309] sm:$0xff] %vm1286, %v1270
        %1288 = vst.msk [vmem:[%s309 + $0x8] sm:$0xff] %vm1286, %v1285
        %s1289 = smul.u32 2, %s20
        %p1290 = scmp.lt.s32.totalorder %s1289, 3
        %s1291 = scalar_select %p1290, %s1289, 3
        %s1292 = smul.addr %s1291, 8
        %s1293 = scalar_lea.vmem %s6, %s1292
        %s1294 = smul.u32 2, %s20
        %p1295 = scmp.lt.s32.totalorder %s1294, 3
        %s1296 = scalar_select %p1295, %s1294, 3
        %s1297 = smul.addr %s1296, 8
        %s1298 = scalar_lea.vmem %s7, %s1297
        // Predicated region
        $region53: #{tpu_custom_call.1} parent=43 // pred_check
          %p1299 = pneg %p169
        $region54: #{tpu_custom_call.1} parent=43 // pred_check_branch
          %1301 = sbr.rel (%p1299) target = $region56
        $region55: #{tpu_custom_call.1} parent=43 // pred_region
          %s1302 = smul.u32 2, %s20
        $region56: #{tpu_custom_call.1} parent=43 // pred_fallthru
          _
        // Predicated region
        $region57: #{tpu_custom_call.1} parent=43 // pred_check
          %p1303 = pneg %p195
        $region58: #{tpu_custom_call.1} parent=43 // pred_check_branch
          %1305 = sbr.rel (%p1303) target = $region60
        $region59: #{tpu_custom_call.1} parent=43 // pred_region
          %s1306 = smul.u32 2, %s20
        $region60: #{tpu_custom_call.1} parent=43 // pred_fallthru
          _
      $region44: #{tpu_custom_call.1} parent=5 // pred_fallthru
        _
      %p1307 = scmp.le.s32.totalorder 2, %s15
      // Predicated region
      $region61: #{tpu_custom_call.1} parent=5 // pred_check
        %p1308 = pneg %p1307
      $region62: #{tpu_custom_call.1} parent=5 // pred_check_branch
        %1310 = sbr.rel (%p1308) target = $region64
      $region63: #{tpu_custom_call.1} parent=5 // pred_region
        %s1311 = ssub.s32 %s15, 2
        // Predicated region
        $region65: #{tpu_custom_call.1} parent=63 // pred_check
          %p1312 = pneg %p175
        $region66: #{tpu_custom_call.1} parent=63 // pred_check_branch
          %1314 = sbr.rel (%p1312) target = $region68
        $region67: #{tpu_custom_call.1} parent=63 // pred_region
          %s1315 = smul.u32 2, %s21
          %p1316 = scmp.lt.s32.totalorder %s1315, 3
          %s1317 = scalar_select %p1316, %s1315, 3
          %s1318 = smul.addr %s1317, 8
          %s1319 = scalar_lea.vmem %s6, %s1318
        $region68: #{tpu_custom_call.1} parent=63 // pred_fallthru
          _
        // Predicated region
        $region69: #{tpu_custom_call.1} parent=63 // pred_check
          %p1320 = pneg %p201
        $region70: #{tpu_custom_call.1} parent=63 // pred_check_branch
          %1322 = sbr.rel (%p1320) target = $region72
        $region71: #{tpu_custom_call.1} parent=63 // pred_region
          %s1323 = smul.u32 2, %s21
          %p1324 = scmp.lt.s32.totalorder %s1323, 3
          %s1325 = scalar_select %p1324, %s1323, 3
          %s1326 = smul.addr %s1325, 8
          %s1327 = scalar_lea.vmem %s7, %s1326
        $region72: #{tpu_custom_call.1} parent=63 // pred_fallthru
          _
      $region64: #{tpu_custom_call.1} parent=5 // pred_fallthru
        _
    $region6: #{tpu_custom_call.1} parent=1 // loop_footer
      %s19 = sadd.s32 1, %s15
    $region7: #{tpu_custom_call.1} parent=1 // loop_footer_branch
      %14 = sbr.rel target = $region3
    $region8: #{tpu_custom_call.1} parent=1 // loop_exit
      _
    %1328 = vsyncpa [#allocation7], 1
    %s1329 = scalar_lea.sflag [#allocation7], 1
    %1330 = vsyncpa %s1329, 1

</llo_original>
